<compile_context>
chip_gen: v5e
topology: v5e:2x2
jax: 0.10.0
libtpu: 0.0.40
codegen_flags: <defaults>
</compile_context>

<pallas_src>
import functools

import jax
import jax.numpy as jnp
from jax.experimental import pallas as pl
from jax.experimental.pallas import tpu as pltpu


def _koopman_kernel(n_enc, n_dec, T, *refs):
    # refs = (x, enc_w[0..n_enc-1], enc_b[0..n_enc-1], Kt,
    #         dec_w[0..n_dec-1], dec_b[0..n_dec-1], out_ref, lat_scratch)
    idx = 0
    x_ref = refs[idx]; idx += 1
    enc_w = refs[idx:idx + n_enc]; idx += n_enc
    enc_b = refs[idx:idx + n_enc]; idx += n_enc
    kt_ref = refs[idx]; idx += 1
    dec_w = refs[idx:idx + n_dec]; idx += n_dec
    dec_b = refs[idx:idx + n_dec]; idx += n_dec
    out_ref = refs[idx]; idx += 1
    lat_ref = refs[idx]                      # VMEM scratch (T*B, latent)

    B = x_ref.shape[0]

    # ---- Encoder MLP: (Linear + ReLU) * (n_enc-1), then final Linear ----
    h = x_ref[...]
    for i in range(n_enc):
        h = jnp.dot(h, enc_w[i][...], preferred_element_type=jnp.float32) + enc_b[i][...]
        if i < n_enc - 1:
            h = jnp.maximum(h, 0.0)
    # h == z_0, shape (B, latent)

    kt = kt_ref[...]                         # (latent, latent), pre-transposed K.weight

    # ---- Koopman rollout (fully unrolled, static store offsets) ----
    # Writes every latent state z_t into the scratch slab; only the tiny
    # z @ Kt chain is serial.
    z = h
    for t in range(T):
        lat_ref[pl.ds(t * B, B), :] = z
        if t < T - 1:
            z = jnp.dot(z, kt, preferred_element_type=jnp.float32)

    # ---- Batched decoder over ALL T*B rows at once ----
    d = lat_ref[...]                         # (T*B, latent)
    for i in range(n_dec):
        d = jnp.dot(d, dec_w[i][...], preferred_element_type=jnp.float32) + dec_b[i][...]
        if i < n_dec - 1:
            d = jnp.maximum(d, 0.0)

    # Single bulk (lane-dense) store of the whole trajectory.
    out_ref[...] = d.astype(out_ref.dtype)


def koopman_forward(x, enc_ws, enc_bs, Kt, dec_ws, dec_bs, T=50):
    """Full Koopman forward pass in a single Pallas kernel (all data in VMEM)."""
    n_enc, n_dec = len(enc_ws), len(dec_ws)
    B, in_size = x.shape
    latent = Kt.shape[0]
    args = [x, *enc_ws, *enc_bs, Kt, *dec_ws, *dec_bs]
    vmem_spec = pl.BlockSpec(memory_space=pltpu.MemorySpace.VMEM)
    kernel = functools.partial(_koopman_kernel, n_enc, n_dec, T)
    out2d = pl.pallas_call(
        kernel,
        out_shape=jax.ShapeDtypeStruct((T * B, in_size), jnp.float32),
        in_specs=[vmem_spec] * len(args),
        out_specs=vmem_spec,
        scratch_shapes=[pltpu.VMEM((T * B, latent), jnp.float32)],
    )(*args)
    # Row t*B + b of the 2-D slab is Decoder(K^t(Encoder(x)))[b].
    return out2d.reshape(T, B, in_size)


def _reference_forward(x, enc_ws, enc_bs, Kt, dec_ws, dec_bs, T=50):
    """Pure-JAX reference mirroring the PyTorch module."""
    h = x
    for i, (w, b) in enumerate(zip(enc_ws, enc_bs)):
        h = h @ w + b
        if i < len(enc_ws) - 1:
            h = jnp.maximum(h, 0.0)
    latents = [h]
    for _ in range(T - 1):
        latents.append(latents[-1] @ Kt)
    outs = []
    for z in latents:
        d = z
        for i, (w, b) in enumerate(zip(dec_ws, dec_bs)):
            d = d @ w + b
            if i < len(dec_ws) - 1:
                d = jnp.maximum(d, 0.0)
        outs.append(d)
    return jnp.stack(outs, axis=0)


def _init_params(key, inputSize, hiddenSize, hiddenLayer, latentSize):
    """Deterministic synthetic parameters (shapes match the PyTorch module)."""
    enc_dims = [(inputSize, hiddenSize)] + [(hiddenSize, hiddenSize)] * hiddenLayer \
        + [(hiddenSize, latentSize)]
    dec_dims = [(latentSize, hiddenSize)] + [(hiddenSize, hiddenSize)] * hiddenLayer \
        + [(hiddenSize, inputSize)]

    enc_ws, enc_bs, dec_ws, dec_bs = [], [], [], []
    for (din, dout) in enc_dims:
        key, k1, k2 = jax.random.split(key, 3)
        enc_ws.append(0.1 * jax.random.normal(k1, (din, dout), jnp.float32))
        enc_bs.append(0.1 * jax.random.normal(k2, (1, dout), jnp.float32))
    for (din, dout) in dec_dims:
        key, k1, k2 = jax.random.split(key, 3)
        dec_ws.append(0.1 * jax.random.normal(k1, (din, dout), jnp.float32))
        dec_bs.append(0.1 * jax.random.normal(k2, (1, dout), jnp.float32))
    key, kk = jax.random.split(key)
    Kt = 0.1 * jax.random.normal(kk, (latentSize, latentSize), jnp.float32)  # K.weight.T
    return enc_ws, enc_bs, Kt, dec_ws, dec_bs, key


if __name__ == "__main__":
    # Small, forward-consistent shapes
    inputSize, hiddenSize, hiddenLayer, latentSize = 16, 32, 2, 8
    B, T = 2, 50

    key = jax.random.PRNGKey(0)
    enc_ws, enc_bs, Kt, dec_ws, dec_bs, key = _init_params(
        key, inputSize, hiddenSize, hiddenLayer, latentSize)

    key, kx = jax.random.split(key)
    x = jax.random.normal(kx, (B, inputSize), jnp.float32)

    out = koopman_forward(x, enc_ws, enc_bs, Kt, dec_ws, dec_bs, T=T)
    out = jax.block_until_ready(out)

    ref = _reference_forward(x, enc_ws, enc_bs, Kt, dec_ws, dec_bs, T=T)
    assert out.shape == (T, B, inputSize), out.shape
    assert jnp.allclose(out, ref, atol=1e-5, rtol=1e-5), \
        float(jnp.max(jnp.abs(out - ref)))

    print("KERNEL_OK")
</pallas_src>

<mosaic_0001>
module attributes {stable_mosaic.version = 11 : i64} {
  func.func @_koopman_kernel(%arg0: memref<2x16xf32, #tpu.memory_space<vmem>>, %arg1: memref<16x32xf32, #tpu.memory_space<vmem>>, %arg2: memref<32x32xf32, #tpu.memory_space<vmem>>, %arg3: memref<32x32xf32, #tpu.memory_space<vmem>>, %arg4: memref<32x8xf32, #tpu.memory_space<vmem>>, %arg5: memref<1x32xf32, #tpu.memory_space<vmem>>, %arg6: memref<1x32xf32, #tpu.memory_space<vmem>>, %arg7: memref<1x32xf32, #tpu.memory_space<vmem>>, %arg8: memref<1x8xf32, #tpu.memory_space<vmem>>, %arg9: memref<8x8xf32, #tpu.memory_space<vmem>>, %arg10: memref<8x32xf32, #tpu.memory_space<vmem>>, %arg11: memref<32x32xf32, #tpu.memory_space<vmem>>, %arg12: memref<32x32xf32, #tpu.memory_space<vmem>>, %arg13: memref<32x16xf32, #tpu.memory_space<vmem>>, %arg14: memref<1x32xf32, #tpu.memory_space<vmem>>, %arg15: memref<1x32xf32, #tpu.memory_space<vmem>>, %arg16: memref<1x32xf32, #tpu.memory_space<vmem>>, %arg17: memref<1x16xf32, #tpu.memory_space<vmem>>, %arg18: memref<100x16xf32, #tpu.memory_space<vmem>>, %arg19: memref<100x8xf32, #tpu.memory_space<vmem>>) attributes {dimension_semantics = [], scalar_prefetch = 0 : i64, scratch_operands = 1 : i64, tpu.core_type = #tpu.core_type<tc>} {
    %c0 = arith.constant 0 : index
    %c0_0 = arith.constant 0 : index
    %0 = vector.load %arg0[%c0, %c0_0] : memref<2x16xf32, #tpu.memory_space<vmem>>, vector<2x16xf32>
    %c0_1 = arith.constant 0 : index
    %c0_2 = arith.constant 0 : index
    %1 = vector.load %arg1[%c0_1, %c0_2] : memref<16x32xf32, #tpu.memory_space<vmem>>, vector<16x32xf32>
    %cst = arith.constant dense<0.000000e+00> : vector<2x32xf32>
    %2 = tpu.matmul %0, %1, %cst {dimension_numbers = #tpu.dot_dimension_numbers<[1], [0], [0], [1], [0, 0, 1, 1], [], []>} : vector<2x16xf32>, vector<16x32xf32>, vector<2x32xf32> -> vector<2x32xf32>
    %c0_3 = arith.constant 0 : index
    %c0_4 = arith.constant 0 : index
    %3 = vector.load %arg5[%c0_3, %c0_4] : memref<1x32xf32, #tpu.memory_space<vmem>>, vector<1x32xf32>
    %4 = vector.broadcast %3 : vector<1x32xf32> to vector<2x32xf32>
    %5 = arith.addf %2, %4 : vector<2x32xf32>
    %cst_5 = arith.constant 0.000000e+00 : f32
    %6 = vector.broadcast %cst_5 : f32 to vector<2x32xf32>
    %7 = arith.maximumf %5, %6 : vector<2x32xf32>
    %c0_6 = arith.constant 0 : index
    %c0_7 = arith.constant 0 : index
    %8 = vector.load %arg2[%c0_6, %c0_7] : memref<32x32xf32, #tpu.memory_space<vmem>>, vector<32x32xf32>
    %cst_8 = arith.constant dense<0.000000e+00> : vector<2x32xf32>
    %9 = tpu.matmul %7, %8, %cst_8 {dimension_numbers = #tpu.dot_dimension_numbers<[1], [0], [0], [1], [0, 0, 1, 1], [], []>} : vector<2x32xf32>, vector<32x32xf32>, vector<2x32xf32> -> vector<2x32xf32>
    %c0_9 = arith.constant 0 : index
    %c0_10 = arith.constant 0 : index
    %10 = vector.load %arg6[%c0_9, %c0_10] : memref<1x32xf32, #tpu.memory_space<vmem>>, vector<1x32xf32>
    %11 = vector.broadcast %10 : vector<1x32xf32> to vector<2x32xf32>
    %12 = arith.addf %9, %11 : vector<2x32xf32>
    %cst_11 = arith.constant 0.000000e+00 : f32
    %13 = vector.broadcast %cst_11 : f32 to vector<2x32xf32>
    %14 = arith.maximumf %12, %13 : vector<2x32xf32>
    %c0_12 = arith.constant 0 : index
    %c0_13 = arith.constant 0 : index
    %15 = vector.load %arg3[%c0_12, %c0_13] : memref<32x32xf32, #tpu.memory_space<vmem>>, vector<32x32xf32>
    %cst_14 = arith.constant dense<0.000000e+00> : vector<2x32xf32>
    %16 = tpu.matmul %14, %15, %cst_14 {dimension_numbers = #tpu.dot_dimension_numbers<[1], [0], [0], [1], [0, 0, 1, 1], [], []>} : vector<2x32xf32>, vector<32x32xf32>, vector<2x32xf32> -> vector<2x32xf32>
    %c0_15 = arith.constant 0 : index
    %c0_16 = arith.constant 0 : index
    %17 = vector.load %arg7[%c0_15, %c0_16] : memref<1x32xf32, #tpu.memory_space<vmem>>, vector<1x32xf32>
    %18 = vector.broadcast %17 : vector<1x32xf32> to vector<2x32xf32>
    %19 = arith.addf %16, %18 : vector<2x32xf32>
    %cst_17 = arith.constant 0.000000e+00 : f32
    %20 = vector.broadcast %cst_17 : f32 to vector<2x32xf32>
    %21 = arith.maximumf %19, %20 : vector<2x32xf32>
    %c0_18 = arith.constant 0 : index
    %c0_19 = arith.constant 0 : index
    %22 = vector.load %arg4[%c0_18, %c0_19] : memref<32x8xf32, #tpu.memory_space<vmem>>, vector<32x8xf32>
    %cst_20 = arith.constant dense<0.000000e+00> : vector<2x8xf32>
    %23 = tpu.matmul %21, %22, %cst_20 {dimension_numbers = #tpu.dot_dimension_numbers<[1], [0], [0], [1], [0, 0, 1, 1], [], []>} : vector<2x32xf32>, vector<32x8xf32>, vector<2x8xf32> -> vector<2x8xf32>
    %c0_21 = arith.constant 0 : index
    %c0_22 = arith.constant 0 : index
    %24 = vector.load %arg8[%c0_21, %c0_22] : memref<1x8xf32, #tpu.memory_space<vmem>>, vector<1x8xf32>
    %25 = vector.broadcast %24 : vector<1x8xf32> to vector<2x8xf32>
    %26 = arith.addf %23, %25 : vector<2x8xf32>
    %c0_23 = arith.constant 0 : index
    %c0_24 = arith.constant 0 : index
    %27 = vector.load %arg9[%c0_23, %c0_24] : memref<8x8xf32, #tpu.memory_space<vmem>>, vector<8x8xf32>
    %c0_25 = arith.constant 0 : index
    %c0_26 = arith.constant 0 : index
    %28 = vector.load %arg19[%c0_25, %c0_26] : memref<100x8xf32, #tpu.memory_space<vmem>>, vector<2x8xf32>
    tpu.vector_store %arg19[%c0_25, %c0_26], %26 {strides = array<i32>} : memref<100x8xf32, #tpu.memory_space<vmem>>, vector<2x8xf32>,
    %cst_27 = arith.constant dense<0.000000e+00> : vector<2x8xf32>
    %29 = tpu.matmul %26, %27, %cst_27 {dimension_numbers = #tpu.dot_dimension_numbers<[1], [0], [0], [1], [0, 0, 1, 1], [], []>} : vector<2x8xf32>, vector<8x8xf32>, vector<2x8xf32> -> vector<2x8xf32>
    %c2 = arith.constant 2 : index
    %c0_28 = arith.constant 0 : index
    %30 = vector.load %arg19[%c2, %c0_28] : memref<100x8xf32, #tpu.memory_space<vmem>>, vector<2x8xf32>
    tpu.vector_store %arg19[%c2, %c0_28], %29 {strides = array<i32>} : memref<100x8xf32, #tpu.memory_space<vmem>>, vector<2x8xf32>,
    %cst_29 = arith.constant dense<0.000000e+00> : vector<2x8xf32>
    %31 = tpu.matmul %29, %27, %cst_29 {dimension_numbers = #tpu.dot_dimension_numbers<[1], [0], [0], [1], [0, 0, 1, 1], [], []>} : vector<2x8xf32>, vector<8x8xf32>, vector<2x8xf32> -> vector<2x8xf32>
    %c4 = arith.constant 4 : index
    %c0_30 = arith.constant 0 : index
    %32 = vector.load %arg19[%c4, %c0_30] : memref<100x8xf32, #tpu.memory_space<vmem>>, vector<2x8xf32>
    tpu.vector_store %arg19[%c4, %c0_30], %31 {strides = array<i32>} : memref<100x8xf32, #tpu.memory_space<vmem>>, vector<2x8xf32>,
    %cst_31 = arith.constant dense<0.000000e+00> : vector<2x8xf32>
    %33 = tpu.matmul %31, %27, %cst_31 {dimension_numbers = #tpu.dot_dimension_numbers<[1], [0], [0], [1], [0, 0, 1, 1], [], []>} : vector<2x8xf32>, vector<8x8xf32>, vector<2x8xf32> -> vector<2x8xf32>
    %c6 = arith.constant 6 : index
    %c0_32 = arith.constant 0 : index
    %34 = vector.load %arg19[%c6, %c0_32] : memref<100x8xf32, #tpu.memory_space<vmem>>, vector<2x8xf32>
    tpu.vector_store %arg19[%c6, %c0_32], %33 {strides = array<i32>} : memref<100x8xf32, #tpu.memory_space<vmem>>, vector<2x8xf32>,
    %cst_33 = arith.constant dense<0.000000e+00> : vector<2x8xf32>
    %35 = tpu.matmul %33, %27, %cst_33 {dimension_numbers = #tpu.dot_dimension_numbers<[1], [0], [0], [1], [0, 0, 1, 1], [], []>} : vector<2x8xf32>, vector<8x8xf32>, vector<2x8xf32> -> vector<2x8xf32>
    %c8 = arith.constant 8 : index
    %c0_34 = arith.constant 0 : index
    %36 = vector.load %arg19[%c8, %c0_34] : memref<100x8xf32, #tpu.memory_space<vmem>>, vector<2x8xf32>
    tpu.vector_store %arg19[%c8, %c0_34], %35 {strides = array<i32>} : memref<100x8xf32, #tpu.memory_space<vmem>>, vector<2x8xf32>,
    %cst_35 = arith.constant dense<0.000000e+00> : vector<2x8xf32>
    %37 = tpu.matmul %35, %27, %cst_35 {dimension_numbers = #tpu.dot_dimension_numbers<[1], [0], [0], [1], [0, 0, 1, 1], [], []>} : vector<2x8xf32>, vector<8x8xf32>, vector<2x8xf32> -> vector<2x8xf32>
    %c10 = arith.constant 10 : index
    %c0_36 = arith.constant 0 : index
    %38 = vector.load %arg19[%c10, %c0_36] : memref<100x8xf32, #tpu.memory_space<vmem>>, vector<2x8xf32>
    tpu.vector_store %arg19[%c10, %c0_36], %37 {strides = array<i32>} : memref<100x8xf32, #tpu.memory_space<vmem>>, vector<2x8xf32>,
    %cst_37 = arith.constant dense<0.000000e+00> : vector<2x8xf32>
    %39 = tpu.matmul %37, %27, %cst_37 {dimension_numbers = #tpu.dot_dimension_numbers<[1], [0], [0], [1], [0, 0, 1, 1], [], []>} : vector<2x8xf32>, vector<8x8xf32>, vector<2x8xf32> -> vector<2x8xf32>
    %c12 = arith.constant 12 : index
    %c0_38 = arith.constant 0 : index
    %40 = vector.load %arg19[%c12, %c0_38] : memref<100x8xf32, #tpu.memory_space<vmem>>, vector<2x8xf32>
    tpu.vector_store %arg19[%c12, %c0_38], %39 {strides = array<i32>} : memref<100x8xf32, #tpu.memory_space<vmem>>, vector<2x8xf32>,
    %cst_39 = arith.constant dense<0.000000e+00> : vector<2x8xf32>
    %41 = tpu.matmul %39, %27, %cst_39 {dimension_numbers = #tpu.dot_dimension_numbers<[1], [0], [0], [1], [0, 0, 1, 1], [], []>} : vector<2x8xf32>, vector<8x8xf32>, vector<2x8xf32> -> vector<2x8xf32>
    %c14 = arith.constant 14 : index
    %c0_40 = arith.constant 0 : index
    %42 = vector.load %arg19[%c14, %c0_40] : memref<100x8xf32, #tpu.memory_space<vmem>>, vector<2x8xf32>
    tpu.vector_store %arg19[%c14, %c0_40], %41 {strides = array<i32>} : memref<100x8xf32, #tpu.memory_space<vmem>>, vector<2x8xf32>,
    %cst_41 = arith.constant dense<0.000000e+00> : vector<2x8xf32>
    %43 = tpu.matmul %41, %27, %cst_41 {dimension_numbers = #tpu.dot_dimension_numbers<[1], [0], [0], [1], [0, 0, 1, 1], [], []>} : vector<2x8xf32>, vector<8x8xf32>, vector<2x8xf32> -> vector<2x8xf32>
    %c16 = arith.constant 16 : index
    %c0_42 = arith.constant 0 : index
    %44 = vector.load %arg19[%c16, %c0_42] : memref<100x8xf32, #tpu.memory_space<vmem>>, vector<2x8xf32>
    tpu.vector_store %arg19[%c16, %c0_42], %43 {strides = array<i32>} : memref<100x8xf32, #tpu.memory_space<vmem>>, vector<2x8xf32>,
    %cst_43 = arith.constant dense<0.000000e+00> : vector<2x8xf32>
    %45 = tpu.matmul %43, %27, %cst_43 {dimension_numbers = #tpu.dot_dimension_numbers<[1], [0], [0], [1], [0, 0, 1, 1], [], []>} : vector<2x8xf32>, vector<8x8xf32>, vector<2x8xf32> -> vector<2x8xf32>
    %c18 = arith.constant 18 : index
    %c0_44 = arith.constant 0 : index
    %46 = vector.load %arg19[%c18, %c0_44] : memref<100x8xf32, #tpu.memory_space<vmem>>, vector<2x8xf32>
    tpu.vector_store %arg19[%c18, %c0_44], %45 {strides = array<i32>} : memref<100x8xf32, #tpu.memory_space<vmem>>, vector<2x8xf32>,
    %cst_45 = arith.constant dense<0.000000e+00> : vector<2x8xf32>
    %47 = tpu.matmul %45, %27, %cst_45 {dimension_numbers = #tpu.dot_dimension_numbers<[1], [0], [0], [1], [0, 0, 1, 1], [], []>} : vector<2x8xf32>, vector<8x8xf32>, vector<2x8xf32> -> vector<2x8xf32>
    %c20 = arith.constant 20 : index
    %c0_46 = arith.constant 0 : index
    %48 = vector.load %arg19[%c20, %c0_46] : memref<100x8xf32, #tpu.memory_space<vmem>>, vector<2x8xf32>
    tpu.vector_store %arg19[%c20, %c0_46], %47 {strides = array<i32>} : memref<100x8xf32, #tpu.memory_space<vmem>>, vector<2x8xf32>,
    %cst_47 = arith.constant dense<0.000000e+00> : vector<2x8xf32>
    %49 = tpu.matmul %47, %27, %cst_47 {dimension_numbers = #tpu.dot_dimension_numbers<[1], [0], [0], [1], [0, 0, 1, 1], [], []>} : vector<2x8xf32>, vector<8x8xf32>, vector<2x8xf32> -> vector<2x8xf32>
    %c22 = arith.constant 22 : index
    %c0_48 = arith.constant 0 : index
    %50 = vector.load %arg19[%c22, %c0_48] : memref<100x8xf32, #tpu.memory_space<vmem>>, vector<2x8xf32>
    tpu.vector_store %arg19[%c22, %c0_48], %49 {strides = array<i32>} : memref<100x8xf32, #tpu.memory_space<vmem>>, vector<2x8xf32>,
    %cst_49 = arith.constant dense<0.000000e+00> : vector<2x8xf32>
    %51 = tpu.matmul %49, %27, %cst_49 {dimension_numbers = #tpu.dot_dimension_numbers<[1], [0], [0], [1], [0, 0, 1, 1], [], []>} : vector<2x8xf32>, vector<8x8xf32>, vector<2x8xf32> -> vector<2x8xf32>
    %c24 = arith.constant 24 : index
    %c0_50 = arith.constant 0 : index
    %52 = vector.load %arg19[%c24, %c0_50] : memref<100x8xf32, #tpu.memory_space<vmem>>, vector<2x8xf32>
    tpu.vector_store %arg19[%c24, %c0_50], %51 {strides = array<i32>} : memref<100x8xf32, #tpu.memory_space<vmem>>, vector<2x8xf32>,
    %cst_51 = arith.constant dense<0.000000e+00> : vector<2x8xf32>
    %53 = tpu.matmul %51, %27, %cst_51 {dimension_numbers = #tpu.dot_dimension_numbers<[1], [0], [0], [1], [0, 0, 1, 1], [], []>} : vector<2x8xf32>, vector<8x8xf32>, vector<2x8xf32> -> vector<2x8xf32>
    %c26 = arith.constant 26 : index
    %c0_52 = arith.constant 0 : index
    %54 = vector.load %arg19[%c26, %c0_52] : memref<100x8xf32, #tpu.memory_space<vmem>>, vector<2x8xf32>
    tpu.vector_store %arg19[%c26, %c0_52], %53 {strides = array<i32>} : memref<100x8xf32, #tpu.memory_space<vmem>>, vector<2x8xf32>,
    %cst_53 = arith.constant dense<0.000000e+00> : vector<2x8xf32>
    %55 = tpu.matmul %53, %27, %cst_53 {dimension_numbers = #tpu.dot_dimension_numbers<[1], [0], [0], [1], [0, 0, 1, 1], [], []>} : vector<2x8xf32>, vector<8x8xf32>, vector<2x8xf32> -> vector<2x8xf32>
    %c28 = arith.constant 28 : index
    %c0_54 = arith.constant 0 : index
    %56 = vector.load %arg19[%c28, %c0_54] : memref<100x8xf32, #tpu.memory_space<vmem>>, vector<2x8xf32>
    tpu.vector_store %arg19[%c28, %c0_54], %55 {strides = array<i32>} : memref<100x8xf32, #tpu.memory_space<vmem>>, vector<2x8xf32>,
    %cst_55 = arith.constant dense<0.000000e+00> : vector<2x8xf32>
    %57 = tpu.matmul %55, %27, %cst_55 {dimension_numbers = #tpu.dot_dimension_numbers<[1], [0], [0], [1], [0, 0, 1, 1], [], []>} : vector<2x8xf32>, vector<8x8xf32>, vector<2x8xf32> -> vector<2x8xf32>
    %c30 = arith.constant 30 : index
    %c0_56 = arith.constant 0 : index
    %58 = vector.load %arg19[%c30, %c0_56] : memref<100x8xf32, #tpu.memory_space<vmem>>, vector<2x8xf32>
    tpu.vector_store %arg19[%c30, %c0_56], %57 {strides = array<i32>} : memref<100x8xf32, #tpu.memory_space<vmem>>, vector<2x8xf32>,
    %cst_57 = arith.constant dense<0.000000e+00> : vector<2x8xf32>
    %59 = tpu.matmul %57, %27, %cst_57 {dimension_numbers = #tpu.dot_dimension_numbers<[1], [0], [0], [1], [0, 0, 1, 1], [], []>} : vector<2x8xf32>, vector<8x8xf32>, vector<2x8xf32> -> vector<2x8xf32>
    %c32 = arith.constant 32 : index
    %c0_58 = arith.constant 0 : index
    %60 = vector.load %arg19[%c32, %c0_58] : memref<100x8xf32, #tpu.memory_space<vmem>>, vector<2x8xf32>
    tpu.vector_store %arg19[%c32, %c0_58], %59 {strides = array<i32>} : memref<100x8xf32, #tpu.memory_space<vmem>>, vector<2x8xf32>,
    %cst_59 = arith.constant dense<0.000000e+00> : vector<2x8xf32>
    %61 = tpu.matmul %59, %27, %cst_59 {dimension_numbers = #tpu.dot_dimension_numbers<[1], [0], [0], [1], [0, 0, 1, 1], [], []>} : vector<2x8xf32>, vector<8x8xf32>, vector<2x8xf32> -> vector<2x8xf32>
    %c34 = arith.constant 34 : index
    %c0_60 = arith.constant 0 : index
    %62 = vector.load %arg19[%c34, %c0_60] : memref<100x8xf32, #tpu.memory_space<vmem>>, vector<2x8xf32>
    tpu.vector_store %arg19[%c34, %c0_60], %61 {strides = array<i32>} : memref<100x8xf32, #tpu.memory_space<vmem>>, vector<2x8xf32>,
    %cst_61 = arith.constant dense<0.000000e+00> : vector<2x8xf32>
    %63 = tpu.matmul %61, %27, %cst_61 {dimension_numbers = #tpu.dot_dimension_numbers<[1], [0], [0], [1], [0, 0, 1, 1], [], []>} : vector<2x8xf32>, vector<8x8xf32>, vector<2x8xf32> -> vector<2x8xf32>
    %c36 = arith.constant 36 : index
    %c0_62 = arith.constant 0 : index
    %64 = vector.load %arg19[%c36, %c0_62] : memref<100x8xf32, #tpu.memory_space<vmem>>, vector<2x8xf32>
    tpu.vector_store %arg19[%c36, %c0_62], %63 {strides = array<i32>} : memref<100x8xf32, #tpu.memory_space<vmem>>, vector<2x8xf32>,
    %cst_63 = arith.constant dense<0.000000e+00> : vector<2x8xf32>
    %65 = tpu.matmul %63, %27, %cst_63 {dimension_numbers = #tpu.dot_dimension_numbers<[1], [0], [0], [1], [0, 0, 1, 1], [], []>} : vector<2x8xf32>, vector<8x8xf32>, vector<2x8xf32> -> vector<2x8xf32>
    %c38 = arith.constant 38 : index
    %c0_64 = arith.constant 0 : index
    %66 = vector.load %arg19[%c38, %c0_64] : memref<100x8xf32, #tpu.memory_space<vmem>>, vector<2x8xf32>
    tpu.vector_store %arg19[%c38, %c0_64], %65 {strides = array<i32>} : memref<100x8xf32, #tpu.memory_space<vmem>>, vector<2x8xf32>,
    %cst_65 = arith.constant dense<0.000000e+00> : vector<2x8xf32>
    %67 = tpu.matmul %65, %27, %cst_65 {dimension_numbers = #tpu.dot_dimension_numbers<[1], [0], [0], [1], [0, 0, 1, 1], [], []>} : vector<2x8xf32>, vector<8x8xf32>, vector<2x8xf32> -> vector<2x8xf32>
    %c40 = arith.constant 40 : index
    %c0_66 = arith.constant 0 : index
    %68 = vector.load %arg19[%c40, %c0_66] : memref<100x8xf32, #tpu.memory_space<vmem>>, vector<2x8xf32>
    tpu.vector_store %arg19[%c40, %c0_66], %67 {strides = array<i32>} : memref<100x8xf32, #tpu.memory_space<vmem>>, vector<2x8xf32>,
    %cst_67 = arith.constant dense<0.000000e+00> : vector<2x8xf32>
    %69 = tpu.matmul %67, %27, %cst_67 {dimension_numbers = #tpu.dot_dimension_numbers<[1], [0], [0], [1], [0, 0, 1, 1], [], []>} : vector<2x8xf32>, vector<8x8xf32>, vector<2x8xf32> -> vector<2x8xf32>
    %c42 = arith.constant 42 : index
    %c0_68 = arith.constant 0 : index
    %70 = vector.load %arg19[%c42, %c0_68] : memref<100x8xf32, #tpu.memory_space<vmem>>, vector<2x8xf32>
    tpu.vector_store %arg19[%c42, %c0_68], %69 {strides = array<i32>} : memref<100x8xf32, #tpu.memory_space<vmem>>, vector<2x8xf32>,
    %cst_69 = arith.constant dense<0.000000e+00> : vector<2x8xf32>
    %71 = tpu.matmul %69, %27, %cst_69 {dimension_numbers = #tpu.dot_dimension_numbers<[1], [0], [0], [1], [0, 0, 1, 1], [], []>} : vector<2x8xf32>, vector<8x8xf32>, vector<2x8xf32> -> vector<2x8xf32>
    %c44 = arith.constant 44 : index
    %c0_70 = arith.constant 0 : index
    %72 = vector.load %arg19[%c44, %c0_70] : memref<100x8xf32, #tpu.memory_space<vmem>>, vector<2x8xf32>
    tpu.vector_store %arg19[%c44, %c0_70], %71 {strides = array<i32>} : memref<100x8xf32, #tpu.memory_space<vmem>>, vector<2x8xf32>,
    %cst_71 = arith.constant dense<0.000000e+00> : vector<2x8xf32>
    %73 = tpu.matmul %71, %27, %cst_71 {dimension_numbers = #tpu.dot_dimension_numbers<[1], [0], [0], [1], [0, 0, 1, 1], [], []>} : vector<2x8xf32>, vector<8x8xf32>, vector<2x8xf32> -> vector<2x8xf32>
    %c46 = arith.constant 46 : index
    %c0_72 = arith.constant 0 : index
    %74 = vector.load %arg19[%c46, %c0_72] : memref<100x8xf32, #tpu.memory_space<vmem>>, vector<2x8xf32>
    tpu.vector_store %arg19[%c46, %c0_72], %73 {strides = array<i32>} : memref<100x8xf32, #tpu.memory_space<vmem>>, vector<2x8xf32>,
    %cst_73 = arith.constant dense<0.000000e+00> : vector<2x8xf32>
    %75 = tpu.matmul %73, %27, %cst_73 {dimension_numbers = #tpu.dot_dimension_numbers<[1], [0], [0], [1], [0, 0, 1, 1], [], []>} : vector<2x8xf32>, vector<8x8xf32>, vector<2x8xf32> -> vector<2x8xf32>
    %c48 = arith.constant 48 : index
    %c0_74 = arith.constant 0 : index
    %76 = vector.load %arg19[%c48, %c0_74] : memref<100x8xf32, #tpu.memory_space<vmem>>, vector<2x8xf32>
    tpu.vector_store %arg19[%c48, %c0_74], %75 {strides = array<i32>} : memref<100x8xf32, #tpu.memory_space<vmem>>, vector<2x8xf32>,
    %cst_75 = arith.constant dense<0.000000e+00> : vector<2x8xf32>
    %77 = tpu.matmul %75, %27, %cst_75 {dimension_numbers = #tpu.dot_dimension_numbers<[1], [0], [0], [1], [0, 0, 1, 1], [], []>} : vector<2x8xf32>, vector<8x8xf32>, vector<2x8xf32> -> vector<2x8xf32>
    %c50 = arith.constant 50 : index
    %c0_76 = arith.constant 0 : index
    %78 = vector.load %arg19[%c50, %c0_76] : memref<100x8xf32, #tpu.memory_space<vmem>>, vector<2x8xf32>
    tpu.vector_store %arg19[%c50, %c0_76], %77 {strides = array<i32>} : memref<100x8xf32, #tpu.memory_space<vmem>>, vector<2x8xf32>,
    %cst_77 = arith.constant dense<0.000000e+00> : vector<2x8xf32>
    %79 = tpu.matmul %77, %27, %cst_77 {dimension_numbers = #tpu.dot_dimension_numbers<[1], [0], [0], [1], [0, 0, 1, 1], [], []>} : vector<2x8xf32>, vector<8x8xf32>, vector<2x8xf32> -> vector<2x8xf32>
    %c52 = arith.constant 52 : index
    %c0_78 = arith.constant 0 : index
    %80 = vector.load %arg19[%c52, %c0_78] : memref<100x8xf32, #tpu.memory_space<vmem>>, vector<2x8xf32>
    tpu.vector_store %arg19[%c52, %c0_78], %79 {strides = array<i32>} : memref<100x8xf32, #tpu.memory_space<vmem>>, vector<2x8xf32>,
    %cst_79 = arith.constant dense<0.000000e+00> : vector<2x8xf32>
    %81 = tpu.matmul %79, %27, %cst_79 {dimension_numbers = #tpu.dot_dimension_numbers<[1], [0], [0], [1], [0, 0, 1, 1], [], []>} : vector<2x8xf32>, vector<8x8xf32>, vector<2x8xf32> -> vector<2x8xf32>
    %c54 = arith.constant 54 : index
    %c0_80 = arith.constant 0 : index
    %82 = vector.load %arg19[%c54, %c0_80] : memref<100x8xf32, #tpu.memory_space<vmem>>, vector<2x8xf32>
    tpu.vector_store %arg19[%c54, %c0_80], %81 {strides = array<i32>} : memref<100x8xf32, #tpu.memory_space<vmem>>, vector<2x8xf32>,
    %cst_81 = arith.constant dense<0.000000e+00> : vector<2x8xf32>
    %83 = tpu.matmul %81, %27, %cst_81 {dimension_numbers = #tpu.dot_dimension_numbers<[1], [0], [0], [1], [0, 0, 1, 1], [], []>} : vector<2x8xf32>, vector<8x8xf32>, vector<2x8xf32> -> vector<2x8xf32>
    %c56 = arith.constant 56 : index
    %c0_82 = arith.constant 0 : index
    %84 = vector.load %arg19[%c56, %c0_82] : memref<100x8xf32, #tpu.memory_space<vmem>>, vector<2x8xf32>
    tpu.vector_store %arg19[%c56, %c0_82], %83 {strides = array<i32>} : memref<100x8xf32, #tpu.memory_space<vmem>>, vector<2x8xf32>,
    %cst_83 = arith.constant dense<0.000000e+00> : vector<2x8xf32>
    %85 = tpu.matmul %83, %27, %cst_83 {dimension_numbers = #tpu.dot_dimension_numbers<[1], [0], [0], [1], [0, 0, 1, 1], [], []>} : vector<2x8xf32>, vector<8x8xf32>, vector<2x8xf32> -> vector<2x8xf32>
    %c58 = arith.constant 58 : index
    %c0_84 = arith.constant 0 : index
    %86 = vector.load %arg19[%c58, %c0_84] : memref<100x8xf32, #tpu.memory_space<vmem>>, vector<2x8xf32>
    tpu.vector_store %arg19[%c58, %c0_84], %85 {strides = array<i32>} : memref<100x8xf32, #tpu.memory_space<vmem>>, vector<2x8xf32>,
    %cst_85 = arith.constant dense<0.000000e+00> : vector<2x8xf32>
    %87 = tpu.matmul %85, %27, %cst_85 {dimension_numbers = #tpu.dot_dimension_numbers<[1], [0], [0], [1], [0, 0, 1, 1], [], []>} : vector<2x8xf32>, vector<8x8xf32>, vector<2x8xf32> -> vector<2x8xf32>
    %c60 = arith.constant 60 : index
    %c0_86 = arith.constant 0 : index
    %88 = vector.load %arg19[%c60, %c0_86] : memref<100x8xf32, #tpu.memory_space<vmem>>, vector<2x8xf32>
    tpu.vector_store %arg19[%c60, %c0_86], %87 {strides = array<i32>} : memref<100x8xf32, #tpu.memory_space<vmem>>, vector<2x8xf32>,
    %cst_87 = arith.constant dense<0.000000e+00> : vector<2x8xf32>
    %89 = tpu.matmul %87, %27, %cst_87 {dimension_numbers = #tpu.dot_dimension_numbers<[1], [0], [0], [1], [0, 0, 1, 1], [], []>} : vector<2x8xf32>, vector<8x8xf32>, vector<2x8xf32> -> vector<2x8xf32>
    %c62 = arith.constant 62 : index
    %c0_88 = arith.constant 0 : index
    %90 = vector.load %arg19[%c62, %c0_88] : memref<100x8xf32, #tpu.memory_space<vmem>>, vector<2x8xf32>
    tpu.vector_store %arg19[%c62, %c0_88], %89 {strides = array<i32>} : memref<100x8xf32, #tpu.memory_space<vmem>>, vector<2x8xf32>,
    %cst_89 = arith.constant dense<0.000000e+00> : vector<2x8xf32>
    %91 = tpu.matmul %89, %27, %cst_89 {dimension_numbers = #tpu.dot_dimension_numbers<[1], [0], [0], [1], [0, 0, 1, 1], [], []>} : vector<2x8xf32>, vector<8x8xf32>, vector<2x8xf32> -> vector<2x8xf32>
    %c64 = arith.constant 64 : index
    %c0_90 = arith.constant 0 : index
    %92 = vector.load %arg19[%c64, %c0_90] : memref<100x8xf32, #tpu.memory_space<vmem>>, vector<2x8xf32>
    tpu.vector_store %arg19[%c64, %c0_90], %91 {strides = array<i32>} : memref<100x8xf32, #tpu.memory_space<vmem>>, vector<2x8xf32>,
    %cst_91 = arith.constant dense<0.000000e+00> : vector<2x8xf32>
    %93 = tpu.matmul %91, %27, %cst_91 {dimension_numbers = #tpu.dot_dimension_numbers<[1], [0], [0], [1], [0, 0, 1, 1], [], []>} : vector<2x8xf32>, vector<8x8xf32>, vector<2x8xf32> -> vector<2x8xf32>
    %c66 = arith.constant 66 : index
    %c0_92 = arith.constant 0 : index
    %94 = vector.load %arg19[%c66, %c0_92] : memref<100x8xf32, #tpu.memory_space<vmem>>, vector<2x8xf32>
    tpu.vector_store %arg19[%c66, %c0_92], %93 {strides = array<i32>} : memref<100x8xf32, #tpu.memory_space<vmem>>, vector<2x8xf32>,
    %cst_93 = arith.constant dense<0.000000e+00> : vector<2x8xf32>
    %95 = tpu.matmul %93, %27, %cst_93 {dimension_numbers = #tpu.dot_dimension_numbers<[1], [0], [0], [1], [0, 0, 1, 1], [], []>} : vector<2x8xf32>, vector<8x8xf32>, vector<2x8xf32> -> vector<2x8xf32>
    %c68 = arith.constant 68 : index
    %c0_94 = arith.constant 0 : index
    %96 = vector.load %arg19[%c68, %c0_94] : memref<100x8xf32, #tpu.memory_space<vmem>>, vector<2x8xf32>
    tpu.vector_store %arg19[%c68, %c0_94], %95 {strides = array<i32>} : memref<100x8xf32, #tpu.memory_space<vmem>>, vector<2x8xf32>,
    %cst_95 = arith.constant dense<0.000000e+00> : vector<2x8xf32>
    %97 = tpu.matmul %95, %27, %cst_95 {dimension_numbers = #tpu.dot_dimension_numbers<[1], [0], [0], [1], [0, 0, 1, 1], [], []>} : vector<2x8xf32>, vector<8x8xf32>, vector<2x8xf32> -> vector<2x8xf32>
    %c70 = arith.constant 70 : index
    %c0_96 = arith.constant 0 : index
    %98 = vector.load %arg19[%c70, %c0_96] : memref<100x8xf32, #tpu.memory_space<vmem>>, vector<2x8xf32>
    tpu.vector_store %arg19[%c70, %c0_96], %97 {strides = array<i32>} : memref<100x8xf32, #tpu.memory_space<vmem>>, vector<2x8xf32>,
    %cst_97 = arith.constant dense<0.000000e+00> : vector<2x8xf32>
    %99 = tpu.matmul %97, %27, %cst_97 {dimension_numbers = #tpu.dot_dimension_numbers<[1], [0], [0], [1], [0, 0, 1, 1], [], []>} : vector<2x8xf32>, vector<8x8xf32>, vector<2x8xf32> -> vector<2x8xf32>
    %c72 = arith.constant 72 : index
    %c0_98 = arith.constant 0 : index
    %100 = vector.load %arg19[%c72, %c0_98] : memref<100x8xf32, #tpu.memory_space<vmem>>, vector<2x8xf32>
    tpu.vector_store %arg19[%c72, %c0_98], %99 {strides = array<i32>} : memref<100x8xf32, #tpu.memory_space<vmem>>, vector<2x8xf32>,
    %cst_99 = arith.constant dense<0.000000e+00> : vector<2x8xf32>
    %101 = tpu.matmul %99, %27, %cst_99 {dimension_numbers = #tpu.dot_dimension_numbers<[1], [0], [0], [1], [0, 0, 1, 1], [], []>} : vector<2x8xf32>, vector<8x8xf32>, vector<2x8xf32> -> vector<2x8xf32>
    %c74 = arith.constant 74 : index
    %c0_100 = arith.constant 0 : index
    %102 = vector.load %arg19[%c74, %c0_100] : memref<100x8xf32, #tpu.memory_space<vmem>>, vector<2x8xf32>
    tpu.vector_store %arg19[%c74, %c0_100], %101 {strides = array<i32>} : memref<100x8xf32, #tpu.memory_space<vmem>>, vector<2x8xf32>,
    %cst_101 = arith.constant dense<0.000000e+00> : vector<2x8xf32>
    %103 = tpu.matmul %101, %27, %cst_101 {dimension_numbers = #tpu.dot_dimension_numbers<[1], [0], [0], [1], [0, 0, 1, 1], [], []>} : vector<2x8xf32>, vector<8x8xf32>, vector<2x8xf32> -> vector<2x8xf32>
    %c76 = arith.constant 76 : index
    %c0_102 = arith.constant 0 : index
    %104 = vector.load %arg19[%c76, %c0_102] : memref<100x8xf32, #tpu.memory_space<vmem>>, vector<2x8xf32>
    tpu.vector_store %arg19[%c76, %c0_102], %103 {strides = array<i32>} : memref<100x8xf32, #tpu.memory_space<vmem>>, vector<2x8xf32>,
    %cst_103 = arith.constant dense<0.000000e+00> : vector<2x8xf32>
    %105 = tpu.matmul %103, %27, %cst_103 {dimension_numbers = #tpu.dot_dimension_numbers<[1], [0], [0], [1], [0, 0, 1, 1], [], []>} : vector<2x8xf32>, vector<8x8xf32>, vector<2x8xf32> -> vector<2x8xf32>
    %c78 = arith.constant 78 : index
    %c0_104 = arith.constant 0 : index
    %106 = vector.load %arg19[%c78, %c0_104] : memref<100x8xf32, #tpu.memory_space<vmem>>, vector<2x8xf32>
    tpu.vector_store %arg19[%c78, %c0_104], %105 {strides = array<i32>} : memref<100x8xf32, #tpu.memory_space<vmem>>, vector<2x8xf32>,
    %cst_105 = arith.constant dense<0.000000e+00> : vector<2x8xf32>
    %107 = tpu.matmul %105, %27, %cst_105 {dimension_numbers = #tpu.dot_dimension_numbers<[1], [0], [0], [1], [0, 0, 1, 1], [], []>} : vector<2x8xf32>, vector<8x8xf32>, vector<2x8xf32> -> vector<2x8xf32>
    %c80 = arith.constant 80 : index
    %c0_106 = arith.constant 0 : index
    %108 = vector.load %arg19[%c80, %c0_106] : memref<100x8xf32, #tpu.memory_space<vmem>>, vector<2x8xf32>
    tpu.vector_store %arg19[%c80, %c0_106], %107 {strides = array<i32>} : memref<100x8xf32, #tpu.memory_space<vmem>>, vector<2x8xf32>,
    %cst_107 = arith.constant dense<0.000000e+00> : vector<2x8xf32>
    %109 = tpu.matmul %107, %27, %cst_107 {dimension_numbers = #tpu.dot_dimension_numbers<[1], [0], [0], [1], [0, 0, 1, 1], [], []>} : vector<2x8xf32>, vector<8x8xf32>, vector<2x8xf32> -> vector<2x8xf32>
    %c82 = arith.constant 82 : index
    %c0_108 = arith.constant 0 : index
    %110 = vector.load %arg19[%c82, %c0_108] : memref<100x8xf32, #tpu.memory_space<vmem>>, vector<2x8xf32>
    tpu.vector_store %arg19[%c82, %c0_108], %109 {strides = array<i32>} : memref<100x8xf32, #tpu.memory_space<vmem>>, vector<2x8xf32>,
    %cst_109 = arith.constant dense<0.000000e+00> : vector<2x8xf32>
    %111 = tpu.matmul %109, %27, %cst_109 {dimension_numbers = #tpu.dot_dimension_numbers<[1], [0], [0], [1], [0, 0, 1, 1], [], []>} : vector<2x8xf32>, vector<8x8xf32>, vector<2x8xf32> -> vector<2x8xf32>
    %c84 = arith.constant 84 : index
    %c0_110 = arith.constant 0 : index
    %112 = vector.load %arg19[%c84, %c0_110] : memref<100x8xf32, #tpu.memory_space<vmem>>, vector<2x8xf32>
    tpu.vector_store %arg19[%c84, %c0_110], %111 {strides = array<i32>} : memref<100x8xf32, #tpu.memory_space<vmem>>, vector<2x8xf32>,
    %cst_111 = arith.constant dense<0.000000e+00> : vector<2x8xf32>
    %113 = tpu.matmul %111, %27, %cst_111 {dimension_numbers = #tpu.dot_dimension_numbers<[1], [0], [0], [1], [0, 0, 1, 1], [], []>} : vector<2x8xf32>, vector<8x8xf32>, vector<2x8xf32> -> vector<2x8xf32>
    %c86 = arith.constant 86 : index
    %c0_112 = arith.constant 0 : index
    %114 = vector.load %arg19[%c86, %c0_112] : memref<100x8xf32, #tpu.memory_space<vmem>>, vector<2x8xf32>
    tpu.vector_store %arg19[%c86, %c0_112], %113 {strides = array<i32>} : memref<100x8xf32, #tpu.memory_space<vmem>>, vector<2x8xf32>,
    %cst_113 = arith.constant dense<0.000000e+00> : vector<2x8xf32>
    %115 = tpu.matmul %113, %27, %cst_113 {dimension_numbers = #tpu.dot_dimension_numbers<[1], [0], [0], [1], [0, 0, 1, 1], [], []>} : vector<2x8xf32>, vector<8x8xf32>, vector<2x8xf32> -> vector<2x8xf32>
    %c88 = arith.constant 88 : index
    %c0_114 = arith.constant 0 : index
    %116 = vector.load %arg19[%c88, %c0_114] : memref<100x8xf32, #tpu.memory_space<vmem>>, vector<2x8xf32>
    tpu.vector_store %arg19[%c88, %c0_114], %115 {strides = array<i32>} : memref<100x8xf32, #tpu.memory_space<vmem>>, vector<2x8xf32>,
    %cst_115 = arith.constant dense<0.000000e+00> : vector<2x8xf32>
    %117 = tpu.matmul %115, %27, %cst_115 {dimension_numbers = #tpu.dot_dimension_numbers<[1], [0], [0], [1], [0, 0, 1, 1], [], []>} : vector<2x8xf32>, vector<8x8xf32>, vector<2x8xf32> -> vector<2x8xf32>
    %c90 = arith.constant 90 : index
    %c0_116 = arith.constant 0 : index
    %118 = vector.load %arg19[%c90, %c0_116] : memref<100x8xf32, #tpu.memory_space<vmem>>, vector<2x8xf32>
    tpu.vector_store %arg19[%c90, %c0_116], %117 {strides = array<i32>} : memref<100x8xf32, #tpu.memory_space<vmem>>, vector<2x8xf32>,
    %cst_117 = arith.constant dense<0.000000e+00> : vector<2x8xf32>
    %119 = tpu.matmul %117, %27, %cst_117 {dimension_numbers = #tpu.dot_dimension_numbers<[1], [0], [0], [1], [0, 0, 1, 1], [], []>} : vector<2x8xf32>, vector<8x8xf32>, vector<2x8xf32> -> vector<2x8xf32>
    %c92 = arith.constant 92 : index
    %c0_118 = arith.constant 0 : index
    %120 = vector.load %arg19[%c92, %c0_118] : memref<100x8xf32, #tpu.memory_space<vmem>>, vector<2x8xf32>
    tpu.vector_store %arg19[%c92, %c0_118], %119 {strides = array<i32>} : memref<100x8xf32, #tpu.memory_space<vmem>>, vector<2x8xf32>,
    %cst_119 = arith.constant dense<0.000000e+00> : vector<2x8xf32>
    %121 = tpu.matmul %119, %27, %cst_119 {dimension_numbers = #tpu.dot_dimension_numbers<[1], [0], [0], [1], [0, 0, 1, 1], [], []>} : vector<2x8xf32>, vector<8x8xf32>, vector<2x8xf32> -> vector<2x8xf32>
    %c94 = arith.constant 94 : index
    %c0_120 = arith.constant 0 : index
    %122 = vector.load %arg19[%c94, %c0_120] : memref<100x8xf32, #tpu.memory_space<vmem>>, vector<2x8xf32>
    tpu.vector_store %arg19[%c94, %c0_120], %121 {strides = array<i32>} : memref<100x8xf32, #tpu.memory_space<vmem>>, vector<2x8xf32>,
    %cst_121 = arith.constant dense<0.000000e+00> : vector<2x8xf32>
    %123 = tpu.matmul %121, %27, %cst_121 {dimension_numbers = #tpu.dot_dimension_numbers<[1], [0], [0], [1], [0, 0, 1, 1], [], []>} : vector<2x8xf32>, vector<8x8xf32>, vector<2x8xf32> -> vector<2x8xf32>
    %c96 = arith.constant 96 : index
    %c0_122 = arith.constant 0 : index
    %124 = vector.load %arg19[%c96, %c0_122] : memref<100x8xf32, #tpu.memory_space<vmem>>, vector<2x8xf32>
    tpu.vector_store %arg19[%c96, %c0_122], %123 {strides = array<i32>} : memref<100x8xf32, #tpu.memory_space<vmem>>, vector<2x8xf32>,
    %cst_123 = arith.constant dense<0.000000e+00> : vector<2x8xf32>
    %125 = tpu.matmul %123, %27, %cst_123 {dimension_numbers = #tpu.dot_dimension_numbers<[1], [0], [0], [1], [0, 0, 1, 1], [], []>} : vector<2x8xf32>, vector<8x8xf32>, vector<2x8xf32> -> vector<2x8xf32>
    %c98 = arith.constant 98 : index
    %c0_124 = arith.constant 0 : index
    %126 = vector.load %arg19[%c98, %c0_124] : memref<100x8xf32, #tpu.memory_space<vmem>>, vector<2x8xf32>
    tpu.vector_store %arg19[%c98, %c0_124], %125 {strides = array<i32>} : memref<100x8xf32, #tpu.memory_space<vmem>>, vector<2x8xf32>,
    %c0_125 = arith.constant 0 : index
    %c0_126 = arith.constant 0 : index
    %127 = vector.load %arg19[%c0_125, %c0_126] : memref<100x8xf32, #tpu.memory_space<vmem>>, vector<100x8xf32>
    %c0_127 = arith.constant 0 : index
    %c0_128 = arith.constant 0 : index
    %128 = vector.load %arg10[%c0_127, %c0_128] : memref<8x32xf32, #tpu.memory_space<vmem>>, vector<8x32xf32>
    %cst_129 = arith.constant dense<0.000000e+00> : vector<100x32xf32>
    %129 = tpu.matmul %127, %128, %cst_129 {dimension_numbers = #tpu.dot_dimension_numbers<[1], [0], [0], [1], [0, 0, 1, 1], [], []>} : vector<100x8xf32>, vector<8x32xf32>, vector<100x32xf32> -> vector<100x32xf32>
    %c0_130 = arith.constant 0 : index
    %c0_131 = arith.constant 0 : index
    %130 = vector.load %arg14[%c0_130, %c0_131] : memref<1x32xf32, #tpu.memory_space<vmem>>, vector<1x32xf32>
    %131 = vector.broadcast %130 : vector<1x32xf32> to vector<100x32xf32>
    %132 = arith.addf %129, %131 : vector<100x32xf32>
    %cst_132 = arith.constant 0.000000e+00 : f32
    %133 = vector.broadcast %cst_132 : f32 to vector<100x32xf32>
    %134 = arith.maximumf %132, %133 : vector<100x32xf32>
    %c0_133 = arith.constant 0 : index
    %c0_134 = arith.constant 0 : index
    %135 = vector.load %arg11[%c0_133, %c0_134] : memref<32x32xf32, #tpu.memory_space<vmem>>, vector<32x32xf32>
    %cst_135 = arith.constant dense<0.000000e+00> : vector<100x32xf32>
    %136 = tpu.matmul %134, %135, %cst_135 {dimension_numbers = #tpu.dot_dimension_numbers<[1], [0], [0], [1], [0, 0, 1, 1], [], []>} : vector<100x32xf32>, vector<32x32xf32>, vector<100x32xf32> -> vector<100x32xf32>
    %c0_136 = arith.constant 0 : index
    %c0_137 = arith.constant 0 : index
    %137 = vector.load %arg15[%c0_136, %c0_137] : memref<1x32xf32, #tpu.memory_space<vmem>>, vector<1x32xf32>
    %138 = vector.broadcast %137 : vector<1x32xf32> to vector<100x32xf32>
    %139 = arith.addf %136, %138 : vector<100x32xf32>
    %cst_138 = arith.constant 0.000000e+00 : f32
    %140 = vector.broadcast %cst_138 : f32 to vector<100x32xf32>
    %141 = arith.maximumf %139, %140 : vector<100x32xf32>
    %c0_139 = arith.constant 0 : index
    %c0_140 = arith.constant 0 : index
    %142 = vector.load %arg12[%c0_139, %c0_140] : memref<32x32xf32, #tpu.memory_space<vmem>>, vector<32x32xf32>
    %cst_141 = arith.constant dense<0.000000e+00> : vector<100x32xf32>
    %143 = tpu.matmul %141, %142, %cst_141 {dimension_numbers = #tpu.dot_dimension_numbers<[1], [0], [0], [1], [0, 0, 1, 1], [], []>} : vector<100x32xf32>, vector<32x32xf32>, vector<100x32xf32> -> vector<100x32xf32>
    %c0_142 = arith.constant 0 : index
    %c0_143 = arith.constant 0 : index
    %144 = vector.load %arg16[%c0_142, %c0_143] : memref<1x32xf32, #tpu.memory_space<vmem>>, vector<1x32xf32>
    %145 = vector.broadcast %144 : vector<1x32xf32> to vector<100x32xf32>
    %146 = arith.addf %143, %145 : vector<100x32xf32>
    %cst_144 = arith.constant 0.000000e+00 : f32
    %147 = vector.broadcast %cst_144 : f32 to vector<100x32xf32>
    %148 = arith.maximumf %146, %147 : vector<100x32xf32>
    %c0_145 = arith.constant 0 : index
    %c0_146 = arith.constant 0 : index
    %149 = vector.load %arg13[%c0_145, %c0_146] : memref<32x16xf32, #tpu.memory_space<vmem>>, vector<32x16xf32>
    %cst_147 = arith.constant dense<0.000000e+00> : vector<100x16xf32>
    %150 = tpu.matmul %148, %149, %cst_147 {dimension_numbers = #tpu.dot_dimension_numbers<[1], [0], [0], [1], [0, 0, 1, 1], [], []>} : vector<100x32xf32>, vector<32x16xf32>, vector<100x16xf32> -> vector<100x16xf32>
    %c0_148 = arith.constant 0 : index
    %c0_149 = arith.constant 0 : index
    %151 = vector.load %arg17[%c0_148, %c0_149] : memref<1x16xf32, #tpu.memory_space<vmem>>, vector<1x16xf32>
    %152 = vector.broadcast %151 : vector<1x16xf32> to vector<100x16xf32>
    %153 = arith.addf %150, %152 : vector<100x16xf32>
    %c0_150 = arith.constant 0 : index
    %c0_151 = arith.constant 0 : index
    %154 = vector.load %arg18[%c0_150, %c0_151] : memref<100x16xf32, #tpu.memory_space<vmem>>, vector<100x16xf32>
    tpu.vector_store %arg18[%c0_150, %c0_151], %153 {strides = array<i32>} : memref<100x16xf32, #tpu.memory_space<vmem>>, vector<100x16xf32>,
    return
  }
}

</mosaic_0001>

<llo_original>
// kernel: tpu_custom_call.1
$region0: #{tpu_custom_call.1}
  #allocation0 [shape = 'u32[]', space=smem, size = 0x4, offset = 0x4, fixed_abs, tag = 'smem constant byte address 0x4 - core index']
  #allocation1 [shape = 'u32[72,128]{1,0:T(1,128)}', space=vmem, size = 0x9000, scoped, tag = 'internal scratch']
  #allocation2 [shape = 'f32[100,8]{1,0:T(8,128)}', space=vmem, size = 0xd000, scoped, tag = 'scratch operand']
  %s0 = inlined_call_operand.hbm [shape: f32[2,16], index: 0, kind: input, shape index: {}]
  %s1 = inlined_call_operand.hbm [shape: f32[16,32], index: 1, kind: input, shape index: {}]
  %s2 = inlined_call_operand.vmem [shape: f32[32,32], index: 2, kind: input, shape index: {}]
  %s3 = inlined_call_operand.vmem [shape: f32[32,32], index: 3, kind: input, shape index: {}]
  %s4 = inlined_call_operand.vmem [shape: f32[32,8], index: 4, kind: input, shape index: {}]
  %s5 = inlined_call_operand.vmem [shape: f32[1,32], index: 5, kind: input, shape index: {}]
  %s6 = inlined_call_operand.hbm [shape: f32[1,32], index: 6, kind: input, shape index: {}]
  %s7 = inlined_call_operand.hbm [shape: f32[1,32], index: 7, kind: input, shape index: {}]
  %s8 = inlined_call_operand.hbm [shape: f32[1,8], index: 8, kind: input, shape index: {}]
  %s9 = inlined_call_operand.vmem [shape: f32[8,8], index: 9, kind: input, shape index: {}]
  %s10 = inlined_call_operand.vmem [shape: f32[8,32], index: 10, kind: input, shape index: {}]
  %s11 = inlined_call_operand.hbm [shape: f32[32,32], index: 11, kind: input, shape index: {}]
  %s12 = inlined_call_operand.hbm [shape: f32[32,32], index: 12, kind: input, shape index: {}]
  %s13 = inlined_call_operand.vmem [shape: f32[32,16], index: 13, kind: input, shape index: {}]
  %s14 = inlined_call_operand.vmem [shape: f32[1,32], index: 14, kind: input, shape index: {}]
  %s15 = inlined_call_operand.vmem [shape: f32[1,32], index: 15, kind: input, shape index: {}]
  %s16 = inlined_call_operand.vmem [shape: f32[1,32], index: 16, kind: input, shape index: {}]
  %s17 = inlined_call_operand.vmem [shape: f32[1,16], index: 17, kind: input, shape index: {}]
  %s18 = inlined_call_operand.vmem [shape: f32[100,16], index: 18, kind: output, shape index: {}]
  %s19 = sld [smem:[#allocation0]]
  $region110: #{tpu_custom_call.1} parent=0
    _
  %s21 = ssub.s32 1, %s19
  %s22 = scalar_select 0, %s21, %s19
  $region1: #{tpu_custom_call.1} parent=0
    #allocation3 [shape = 'u8[1024]{0}', space=vmem, size = 0x400, scoped, tag = 'input window, operand 0, single buffered']
    #allocation4 [shape = 's32[1]{0}', space=sflag, size = 0x4, scoped, tag = 'scoped memory for tpu_custom_call.1']
    #allocation5 [shape = 'u8[8192]{0}', space=vmem, size = 0x2000, scoped, tag = 'input window, operand 1, single buffered']
    #allocation6 [shape = 's32[1]{0}', space=sflag, size = 0x4, scoped, tag = 'scoped memory for tpu_custom_call.1']
    #allocation7 [shape = 'u8[512]{0}', space=vmem, size = 0x400, scoped, tag = 'input window, operand 6, single buffered']
    #allocation8 [shape = 'u8[512]{0}', space=vmem, size = 0x400, scoped, tag = 'input window, operand 7, single buffered']
    #allocation9 [shape = 's32[1]{0}', space=sflag, size = 0x4, scoped, tag = 'scoped memory for tpu_custom_call.1']
    #allocation10 [shape = 'u8[512]{0}', space=vmem, size = 0x400, scoped, tag = 'input window, operand 8, single buffered']
    #allocation11 [shape = 'u8[16384]{0}', space=vmem, size = 0x4000, scoped, tag = 'input window, operand 11, single buffered']
    #allocation12 [shape = 's32[1]{0}', space=sflag, size = 0x4, scoped, tag = 'scoped memory for tpu_custom_call.1']
    #allocation13 [shape = 'u8[16384]{0}', space=vmem, size = 0x4000, scoped, tag = 'input window, operand 12, single buffered']
    %23 = vsyncpa [#allocation4], 0
    %24 = vsyncpa [#allocation6], 0
    %25 = vsyncpa [#allocation9], 0
    %26 = vsyncpa [#allocation12], 0
    // Predicated region
    $region2: #{tpu_custom_call.1} parent=1 // pred_check
      _
    $region3: #{tpu_custom_call.1} parent=1 // pred_check_branch
      %28 = sbr.rel (0) target = $region5
    $region4: #{tpu_custom_call.1} parent=1 // pred_region
      %30 = vsyncadd [#allocation4], 0
      %s32 = sshll.u32 %s0, 4
      %s33 = int_to_ptr.hbm [resolvable:$true] %s32
      %s34 = sshll.u32 [#allocation3], 4
      %s35 = int_to_ptr.vmem [resolvable:$true] %s34
      %37 = dma.hbm_to_vmem [thread:$0]  %s33, 32, %s35, [#allocation4]
    $region5: #{tpu_custom_call.1} parent=1 // pred_fallthru
      _
    // Predicated region
    $region6: #{tpu_custom_call.1} parent=1 // pred_check
      _
    $region7: #{tpu_custom_call.1} parent=1 // pred_check_branch
      %39 = sbr.rel (0) target = $region9
    $region8: #{tpu_custom_call.1} parent=1 // pred_region
      %41 = vsyncadd [#allocation6], 0
      %s42 = sshll.u32 %s1, 4
      %s43 = int_to_ptr.hbm [resolvable:$true] %s42
      %s44 = sshll.u32 [#allocation5], 4
      %s45 = int_to_ptr.vmem [resolvable:$true] %s44
      %50 = dma.hbm_to_vmem [thread:$0]  %s43, 256, %s45, [#allocation6], 128, 128, 8
    $region9: #{tpu_custom_call.1} parent=1 // pred_fallthru
      _
    // Predicated region
    $region10: #{tpu_custom_call.1} parent=1 // pred_check
      _
    $region11: #{tpu_custom_call.1} parent=1 // pred_check_branch
      %52 = sbr.rel (0) target = $region13
    $region12: #{tpu_custom_call.1} parent=1 // pred_region
      _
    $region13: #{tpu_custom_call.1} parent=1 // pred_fallthru
      _
    // Predicated region
    $region14: #{tpu_custom_call.1} parent=1 // pred_check
      _
    $region15: #{tpu_custom_call.1} parent=1 // pred_check_branch
      %54 = sbr.rel (0) target = $region17
    $region16: #{tpu_custom_call.1} parent=1 // pred_region
      _
    $region17: #{tpu_custom_call.1} parent=1 // pred_fallthru
      _
    // Predicated region
    $region18: #{tpu_custom_call.1} parent=1 // pred_check
      _
    $region19: #{tpu_custom_call.1} parent=1 // pred_check_branch
      %56 = sbr.rel (0) target = $region21
    $region20: #{tpu_custom_call.1} parent=1 // pred_region
      _
    $region21: #{tpu_custom_call.1} parent=1 // pred_fallthru
      _
    // Predicated region
    $region22: #{tpu_custom_call.1} parent=1 // pred_check
      _
    $region23: #{tpu_custom_call.1} parent=1 // pred_check_branch
      %58 = sbr.rel (0) target = $region25
    $region24: #{tpu_custom_call.1} parent=1 // pred_region
      _
    $region25: #{tpu_custom_call.1} parent=1 // pred_fallthru
      _
    // Predicated region
    $region26: #{tpu_custom_call.1} parent=1 // pred_check
      _
    $region27: #{tpu_custom_call.1} parent=1 // pred_check_branch
      %60 = sbr.rel (0) target = $region29
    $region28: #{tpu_custom_call.1} parent=1 // pred_region
      %62 = vsyncadd [#allocation6], 0
      %s64 = sshll.u32 %s6, 4
      %s65 = int_to_ptr.hbm [resolvable:$true] %s64
      %s66 = sshll.u32 [#allocation7], 4
      %s67 = int_to_ptr.vmem [resolvable:$true] %s66
      %69 = dma.hbm_to_vmem [thread:$0]  %s65, 16, %s67, [#allocation6]
    $region29: #{tpu_custom_call.1} parent=1 // pred_fallthru
      _
    // Predicated region
    $region30: #{tpu_custom_call.1} parent=1 // pred_check
      _
    $region31: #{tpu_custom_call.1} parent=1 // pred_check_branch
      %71 = sbr.rel (0) target = $region33
    $region32: #{tpu_custom_call.1} parent=1 // pred_region
      %73 = vsyncadd [#allocation9], 0
      %s75 = sshll.u32 %s7, 4
      %s76 = int_to_ptr.hbm [resolvable:$true] %s75
      %s77 = sshll.u32 [#allocation8], 4
      %s78 = int_to_ptr.vmem [resolvable:$true] %s77
      %80 = dma.hbm_to_vmem [thread:$0]  %s76, 16, %s78, [#allocation9]
    $region33: #{tpu_custom_call.1} parent=1 // pred_fallthru
      _
    // Predicated region
    $region34: #{tpu_custom_call.1} parent=1 // pred_check
      _
    $region35: #{tpu_custom_call.1} parent=1 // pred_check_branch
      %82 = sbr.rel (0) target = $region37
    $region36: #{tpu_custom_call.1} parent=1 // pred_region
      %84 = vsyncadd [#allocation9], 0
      %s86 = sshll.u32 %s8, 4
      %s87 = int_to_ptr.hbm [resolvable:$true] %s86
      %s88 = sshll.u32 [#allocation10], 4
      %s89 = int_to_ptr.vmem [resolvable:$true] %s88
      %91 = dma.hbm_to_vmem [thread:$0]  %s87, 16, %s89, [#allocation9]
    $region37: #{tpu_custom_call.1} parent=1 // pred_fallthru
      _
    // Predicated region
    $region38: #{tpu_custom_call.1} parent=1 // pred_check
      _
    $region39: #{tpu_custom_call.1} parent=1 // pred_check_branch
      %93 = sbr.rel (0) target = $region41
    $region40: #{tpu_custom_call.1} parent=1 // pred_region
      _
    $region41: #{tpu_custom_call.1} parent=1 // pred_fallthru
      _
    // Predicated region
    $region42: #{tpu_custom_call.1} parent=1 // pred_check
      _
    $region43: #{tpu_custom_call.1} parent=1 // pred_check_branch
      %95 = sbr.rel (0) target = $region45
    $region44: #{tpu_custom_call.1} parent=1 // pred_region
      _
    $region45: #{tpu_custom_call.1} parent=1 // pred_fallthru
      _
    // Predicated region
    $region46: #{tpu_custom_call.1} parent=1 // pred_check
      _
    $region47: #{tpu_custom_call.1} parent=1 // pred_check_branch
      %97 = sbr.rel (0) target = $region49
    $region48: #{tpu_custom_call.1} parent=1 // pred_region
      %99 = vsyncadd [#allocation12], 0
      %s100 = sshll.u32 %s11, 4
      %s101 = int_to_ptr.hbm [resolvable:$true] %s100
      %s102 = sshll.u32 [#allocation11], 4
      %s103 = int_to_ptr.vmem [resolvable:$true] %s102
      %108 = dma.hbm_to_vmem [thread:$0]  %s101, 512, %s103, [#allocation12], 128, 128, 8
    $region49: #{tpu_custom_call.1} parent=1 // pred_fallthru
      _
    // Predicated region
    $region50: #{tpu_custom_call.1} parent=1 // pred_check
      _
    $region51: #{tpu_custom_call.1} parent=1 // pred_check_branch
      %110 = sbr.rel (0) target = $region53
    $region52: #{tpu_custom_call.1} parent=1 // pred_region
      %112 = vsyncadd [#allocation12], 0
      %s113 = sshll.u32 %s12, 4
      %s114 = int_to_ptr.hbm [resolvable:$true] %s113
      %s115 = sshll.u32 [#allocation13], 4
      %s116 = int_to_ptr.vmem [resolvable:$true] %s115
      %121 = dma.hbm_to_vmem [thread:$0]  %s114, 512, %s116, [#allocation12], 128, 128, 8
    $region53: #{tpu_custom_call.1} parent=1 // pred_fallthru
      _
    // Predicated region
    $region54: #{tpu_custom_call.1} parent=1 // pred_check
      _
    $region55: #{tpu_custom_call.1} parent=1 // pred_check_branch
      %123 = sbr.rel (0) target = $region57
    $region56: #{tpu_custom_call.1} parent=1 // pred_region
      _
    $region57: #{tpu_custom_call.1} parent=1 // pred_fallthru
      _
    // Predicated region
    $region58: #{tpu_custom_call.1} parent=1 // pred_check
      _
    $region59: #{tpu_custom_call.1} parent=1 // pred_check_branch
      %125 = sbr.rel (0) target = $region61
    $region60: #{tpu_custom_call.1} parent=1 // pred_region
      _
    $region61: #{tpu_custom_call.1} parent=1 // pred_fallthru
      _
    // Predicated region
    $region62: #{tpu_custom_call.1} parent=1 // pred_check
      _
    $region63: #{tpu_custom_call.1} parent=1 // pred_check_branch
      %127 = sbr.rel (0) target = $region65
    $region64: #{tpu_custom_call.1} parent=1 // pred_region
      _
    $region65: #{tpu_custom_call.1} parent=1 // pred_fallthru
      _
    // Predicated region
    $region66: #{tpu_custom_call.1} parent=1 // pred_check
      _
    $region67: #{tpu_custom_call.1} parent=1 // pred_check_branch
      %129 = sbr.rel (0) target = $region69
    $region68: #{tpu_custom_call.1} parent=1 // pred_region
      _
    $region69: #{tpu_custom_call.1} parent=1 // pred_fallthru
      _
    // Predicated region
    $region70: #{tpu_custom_call.1} parent=1 // pred_check
      _
    $region71: #{tpu_custom_call.1} parent=1 // pred_check_branch
      %131 = sbr.rel (0) target = $region73
    $region72: #{tpu_custom_call.1} parent=1 // pred_region
      _
    $region73: #{tpu_custom_call.1} parent=1 // pred_fallthru
      _
    // Predicated region
    $region74: #{tpu_custom_call.1} parent=1 // pred_check
      _
    $region75: #{tpu_custom_call.1} parent=1 // pred_check_branch
      %133 = sbr.rel (0) target = $region77
    $region76: #{tpu_custom_call.1} parent=1 // pred_region
      %135 = dma.done [#allocation4], 32
    $region77: #{tpu_custom_call.1} parent=1 // pred_fallthru
      _
    // Predicated region
    $region78: #{tpu_custom_call.1} parent=1 // pred_check
      _
    $region79: #{tpu_custom_call.1} parent=1 // pred_check_branch
      %137 = sbr.rel (0) target = $region81
    $region80: #{tpu_custom_call.1} parent=1 // pred_region
      %139 = dma.done [#allocation6], 256
    $region81: #{tpu_custom_call.1} parent=1 // pred_fallthru
      _
    // Predicated region
    $region82: #{tpu_custom_call.1} parent=1 // pred_check
      _
    $region83: #{tpu_custom_call.1} parent=1 // pred_check_branch
      %141 = sbr.rel (0) target = $region85
    $region84: #{tpu_custom_call.1} parent=1 // pred_region
      %143 = dma.done [#allocation6], 16
    $region85: #{tpu_custom_call.1} parent=1 // pred_fallthru
      _
    // Predicated region
    $region86: #{tpu_custom_call.1} parent=1 // pred_check
      _
    $region87: #{tpu_custom_call.1} parent=1 // pred_check_branch
      %145 = sbr.rel (0) target = $region89
    $region88: #{tpu_custom_call.1} parent=1 // pred_region
      %147 = dma.done [#allocation9], 16
    $region89: #{tpu_custom_call.1} parent=1 // pred_fallthru
      _
    // Predicated region
    $region90: #{tpu_custom_call.1} parent=1 // pred_check
      _
    $region91: #{tpu_custom_call.1} parent=1 // pred_check_branch
      %149 = sbr.rel (0) target = $region93
    $region92: #{tpu_custom_call.1} parent=1 // pred_region
      %151 = dma.done [#allocation9], 16
    $region93: #{tpu_custom_call.1} parent=1 // pred_fallthru
      _
    // Predicated region
    $region94: #{tpu_custom_call.1} parent=1 // pred_check
      _
    $region95: #{tpu_custom_call.1} parent=1 // pred_check_branch
      %153 = sbr.rel (0) target = $region97
    $region96: #{tpu_custom_call.1} parent=1 // pred_region
      %155 = dma.done [#allocation12], 512
    $region97: #{tpu_custom_call.1} parent=1 // pred_fallthru
      _
    // Predicated region
    $region98: #{tpu_custom_call.1} parent=1 // pred_check
      _
    $region99: #{tpu_custom_call.1} parent=1 // pred_check_branch
      %157 = sbr.rel (0) target = $region101
    $region100: #{tpu_custom_call.1} parent=1 // pred_region
      %159 = dma.done [#allocation12], 512
    $region101: #{tpu_custom_call.1} parent=1 // pred_fallthru
      _
    %v160 = vld [vmem:[#allocation3] sm:$0x3]
    %v161 = vld [vmem:[#allocation5] sm:$0xff]
    %v162 = vld [vmem:[#allocation5 + $0x8] sm:$0xff]
    %v163 = vld [vmem:[%s5] sm:$0x1]
    %v165 = vperm.slane %v163, 0
    %vm167 = vcmask 130048
    %v169 = vsel %vm167, %v160, 0
    %171 = vmatpush.msra.mxu0 0.0
    %172 = vmatpush.msra.mxu0 0.0
    %173 = vmatpush.msra.mxu0 0.0
    %174 = vmatpush.msra.mxu0 0.0
    %175 = vmatpush.msra.mxu0 0.0
    %176 = vmatpush.msra.mxu0 0.0
    %177 = vmatpush.msra.mxu0 0.0
    %178 = vmatpush.msra.mxu0 0.0
    %179 = vmatpush.msra.mxu0 0.0
    %180 = vmatpush.msra.mxu0 0.0
    %181 = vmatpush.msra.mxu0 0.0
    %182 = vmatpush.msra.mxu0 0.0
    %183 = vmatpush.msra.mxu0 0.0
    %184 = vmatpush.msra.mxu0 0.0
    %185 = vmatpush.msra.mxu0 %v162
    %186 = vmatpush.msra.mxu0 %v161
    %187 = vmatmul.f32.gmra.mxu0 %v169
    %v188 = vpop.f32.mrf.mxu0
    %v189 = vadd.f32 %v165, %v188
    %190 = vdwg.mxu0
    %v191 = vmax.f32 %v189, 0.0
    %v192 = vld [vmem:[%s2] sm:$0xff]
    %v193 = vld [vmem:[%s2 + $0x8] sm:$0xff]
    %v194 = vld [vmem:[%s2 + $0x10] sm:$0xff]
    %v195 = vld [vmem:[%s2 + $0x18] sm:$0xff]
    %v196 = vld [vmem:[#allocation7] sm:$0x1]
    %v198 = vperm.slane %v196, 0
    %vm200 = vcmask 261120
    %v202 = vsel %vm200, %v191, 0
    %204 = vmatpush.msra.mxu0 0.0
    %205 = vmatpush.msra.mxu0 0.0
    %206 = vmatpush.msra.mxu0 0.0
    %207 = vmatpush.msra.mxu0 0.0
    %208 = vmatpush.msra.mxu0 0.0
    %209 = vmatpush.msra.mxu0 0.0
    %210 = vmatpush.msra.mxu0 0.0
    %211 = vmatpush.msra.mxu0 0.0
    %212 = vmatpush.msra.mxu0 0.0
    %213 = vmatpush.msra.mxu0 0.0
    %214 = vmatpush.msra.mxu0 0.0
    %215 = vmatpush.msra.mxu0 0.0
    %216 = vmatpush.msra.mxu0 %v195
    %217 = vmatpush.msra.mxu0 %v194
    %218 = vmatpush.msra.mxu0 %v193
    %219 = vmatpush.msra.mxu0 %v192
    %220 = vmatmul.f32.gmra.mxu0 %v202
    %v221 = vpop.f32.mrf.mxu0
    %v222 = vadd.f32 %v198, %v221
    %223 = vdwg.mxu0
    %v224 = vmax.f32 %v222, 0.0
    %v225 = vld [vmem:[%s3] sm:$0xff]
    %v226 = vld [vmem:[%s3 + $0x8] sm:$0xff]
    %v227 = vld [vmem:[%s3 + $0x10] sm:$0xff]
    %v228 = vld [vmem:[%s3 + $0x18] sm:$0xff]
    %v229 = vld [vmem:[#allocation8] sm:$0x1]
    %v231 = vperm.slane %v229, 0
    %v234 = vsel %vm200, %v224, 0
    %236 = vmatpush.msra.mxu0 0.0
    %237 = vmatpush.msra.mxu0 0.0
    %238 = vmatpush.msra.mxu0 0.0
    %239 = vmatpush.msra.mxu0 0.0
    %240 = vmatpush.msra.mxu0 0.0
    %241 = vmatpush.msra.mxu0 0.0
    %242 = vmatpush.msra.mxu0 0.0
    %243 = vmatpush.msra.mxu0 0.0
    %244 = vmatpush.msra.mxu0 0.0
    %245 = vmatpush.msra.mxu0 0.0
    %246 = vmatpush.msra.mxu0 0.0
    %247 = vmatpush.msra.mxu0 0.0
    %248 = vmatpush.msra.mxu0 %v228
    %249 = vmatpush.msra.mxu0 %v227
    %250 = vmatpush.msra.mxu0 %v226
    %251 = vmatpush.msra.mxu0 %v225
    %252 = vmatmul.f32.gmra.mxu0 %v234
    %v253 = vpop.f32.mrf.mxu0
    %v254 = vadd.f32 %v231, %v253
    %255 = vdwg.mxu0
    %v256 = vmax.f32 %v254, 0.0
    %v257 = vld [vmem:[%s4] sm:$0xff]
    %v258 = vld [vmem:[%s4 + $0x8] sm:$0xff]
    %v259 = vld [vmem:[%s4 + $0x10] sm:$0xff]
    %v260 = vld [vmem:[%s4 + $0x18] sm:$0xff]
    %v261 = vld [vmem:[#allocation10] sm:$0x1]
    %v263 = vperm.slane %v261, 0
    %v266 = vsel %vm200, %v256, 0
    %268 = vmatpush.msra.mxu0 0.0
    %269 = vmatpush.msra.mxu0 0.0
    %270 = vmatpush.msra.mxu0 0.0
    %271 = vmatpush.msra.mxu0 0.0
    %272 = vmatpush.msra.mxu0 0.0
    %273 = vmatpush.msra.mxu0 0.0
    %274 = vmatpush.msra.mxu0 0.0
    %275 = vmatpush.msra.mxu0 0.0
    %276 = vmatpush.msra.mxu0 0.0
    %277 = vmatpush.msra.mxu0 0.0
    %278 = vmatpush.msra.mxu0 0.0
    %279 = vmatpush.msra.mxu0 0.0
    %280 = vmatpush.msra.mxu0 %v260
    %281 = vmatpush.msra.mxu0 %v259
    %282 = vmatpush.msra.mxu0 %v258
    %283 = vmatpush.msra.mxu0 %v257
    %284 = vmatmul.f32.gmra.mxu0 %v266
    %v285 = vpop.f32.mrf.mxu0
    %v286 = vadd.f32 %v263, %v285
    %287 = vdwg.mxu0
    %v288 = vld [vmem:[%s9] sm:$0xff]
    %vm289 = vcmask 58368
    %290 = vst.msk [vmem:[#allocation2] sm:$0x3] %vm289, %v286
    %vm291 = vcmask 64512
    %v293 = vsel %vm291, %v286, 0
    %295 = vmatpush.msra.mxu0 0.0
    %296 = vmatpush.msra.mxu0 0.0
    %297 = vmatpush.msra.mxu0 0.0
    %298 = vmatpush.msra.mxu0 0.0
    %299 = vmatpush.msra.mxu0 0.0
    %300 = vmatpush.msra.mxu0 0.0
    %301 = vmatpush.msra.mxu0 0.0
    %302 = vmatpush.msra.mxu0 0.0
    %303 = vmatpush.msra.mxu0 0.0
    %304 = vmatpush.msra.mxu0 0.0
    %305 = vmatpush.msra.mxu0 0.0
    %306 = vmatpush.msra.mxu0 0.0
    %307 = vmatpush.msra.mxu0 0.0
    %308 = vmatpush.msra.mxu0 0.0
    %309 = vmatpush.msra.mxu0 0.0
    %310 = vmatpush.msra.mxu0 %v288
    %311 = vmatmul.f32.gmra.mxu0 %v293
    %v312 = vpop.f32.mrf.mxu0
    %v313 = vadd.f32 0.0, %v312
    %314 = vdwg.mxu0
    %315 = vst.msk [vmem:[#allocation2 + $0x2] sm:$0x3] %vm289, %v313
    %v317 = vsel %vm291, %v313, 0
    %319 = vmatpush.msra.mxu0 0.0
    %320 = vmatpush.msra.mxu0 0.0
    %321 = vmatpush.msra.mxu0 0.0
    %322 = vmatpush.msra.mxu0 0.0
    %323 = vmatpush.msra.mxu0 0.0
    %324 = vmatpush.msra.mxu0 0.0
    %325 = vmatpush.msra.mxu0 0.0
    %326 = vmatpush.msra.mxu0 0.0
    %327 = vmatpush.msra.mxu0 0.0
    %328 = vmatpush.msra.mxu0 0.0
    %329 = vmatpush.msra.mxu0 0.0
    %330 = vmatpush.msra.mxu0 0.0
    %331 = vmatpush.msra.mxu0 0.0
    %332 = vmatpush.msra.mxu0 0.0
    %333 = vmatpush.msra.mxu0 0.0
    %334 = vmatpush.msra.mxu0 %v288
    %335 = vmatmul.f32.gmra.mxu0 %v317
    %v336 = vpop.f32.mrf.mxu0
    %v337 = vadd.f32 0.0, %v336
    %338 = vdwg.mxu0
    %339 = vst.msk [vmem:[#allocation2 + $0x4] sm:$0x3] %vm289, %v337
    %v341 = vsel %vm291, %v337, 0
    %343 = vmatpush.msra.mxu0 0.0
    %344 = vmatpush.msra.mxu0 0.0
    %345 = vmatpush.msra.mxu0 0.0
    %346 = vmatpush.msra.mxu0 0.0
    %347 = vmatpush.msra.mxu0 0.0
    %348 = vmatpush.msra.mxu0 0.0
    %349 = vmatpush.msra.mxu0 0.0
    %350 = vmatpush.msra.mxu0 0.0
    %351 = vmatpush.msra.mxu0 0.0
    %352 = vmatpush.msra.mxu0 0.0
    %353 = vmatpush.msra.mxu0 0.0
    %354 = vmatpush.msra.mxu0 0.0
    %355 = vmatpush.msra.mxu0 0.0
    %356 = vmatpush.msra.mxu0 0.0
    %357 = vmatpush.msra.mxu0 0.0
    %358 = vmatpush.msra.mxu0 %v288
    %359 = vmatmul.f32.gmra.mxu0 %v341
    %v360 = vpop.f32.mrf.mxu0
    %v361 = vadd.f32 0.0, %v360
    %362 = vdwg.mxu0
    %363 = vst.msk [vmem:[#allocation2 + $0x6] sm:$0x3] %vm289, %v361
    %v365 = vsel %vm291, %v361, 0
    %367 = vmatpush.msra.mxu0 0.0
    %368 = vmatpush.msra.mxu0 0.0
    %369 = vmatpush.msra.mxu0 0.0
    %370 = vmatpush.msra.mxu0 0.0
    %371 = vmatpush.msra.mxu0 0.0
    %372 = vmatpush.msra.mxu0 0.0
    %373 = vmatpush.msra.mxu0 0.0
    %374 = vmatpush.msra.mxu0 0.0
    %375 = vmatpush.msra.mxu0 0.0
    %376 = vmatpush.msra.mxu0 0.0
    %377 = vmatpush.msra.mxu0 0.0
    %378 = vmatpush.msra.mxu0 0.0
    %379 = vmatpush.msra.mxu0 0.0
    %380 = vmatpush.msra.mxu0 0.0
    %381 = vmatpush.msra.mxu0 0.0
    %382 = vmatpush.msra.mxu0 %v288
    %383 = vmatmul.f32.gmra.mxu0 %v365
    %v384 = vpop.f32.mrf.mxu0
    %v385 = vadd.f32 0.0, %v384
    %386 = vdwg.mxu0
    %387 = vst.msk [vmem:[#allocation2 + $0x8] sm:$0x3] %vm289, %v385
    %v389 = vsel %vm291, %v385, 0
    %391 = vmatpush.msra.mxu0 0.0
    %392 = vmatpush.msra.mxu0 0.0
    %393 = vmatpush.msra.mxu0 0.0
    %394 = vmatpush.msra.mxu0 0.0
    %395 = vmatpush.msra.mxu0 0.0
    %396 = vmatpush.msra.mxu0 0.0
    %397 = vmatpush.msra.mxu0 0.0
    %398 = vmatpush.msra.mxu0 0.0
    %399 = vmatpush.msra.mxu0 0.0
    %400 = vmatpush.msra.mxu0 0.0
    %401 = vmatpush.msra.mxu0 0.0
    %402 = vmatpush.msra.mxu0 0.0
    %403 = vmatpush.msra.mxu0 0.0
    %404 = vmatpush.msra.mxu0 0.0
    %405 = vmatpush.msra.mxu0 0.0
    %406 = vmatpush.msra.mxu0 %v288
    %407 = vmatmul.f32.gmra.mxu0 %v389
    %v408 = vpop.f32.mrf.mxu0
    %v409 = vadd.f32 0.0, %v408
    %410 = vdwg.mxu0
    %411 = vst.msk [vmem:[#allocation2 + $0xa] sm:$0x3] %vm289, %v409
    %v413 = vsel %vm291, %v409, 0
    %415 = vmatpush.msra.mxu0 0.0
    %416 = vmatpush.msra.mxu0 0.0
    %417 = vmatpush.msra.mxu0 0.0
    %418 = vmatpush.msra.mxu0 0.0
    %419 = vmatpush.msra.mxu0 0.0
    %420 = vmatpush.msra.mxu0 0.0
    %421 = vmatpush.msra.mxu0 0.0
    %422 = vmatpush.msra.mxu0 0.0
    %423 = vmatpush.msra.mxu0 0.0
    %424 = vmatpush.msra.mxu0 0.0
    %425 = vmatpush.msra.mxu0 0.0
    %426 = vmatpush.msra.mxu0 0.0
    %427 = vmatpush.msra.mxu0 0.0
    %428 = vmatpush.msra.mxu0 0.0
    %429 = vmatpush.msra.mxu0 0.0
    %430 = vmatpush.msra.mxu0 %v288
    %431 = vmatmul.f32.gmra.mxu0 %v413
    %v432 = vpop.f32.mrf.mxu0
    %v433 = vadd.f32 0.0, %v432
    %434 = vdwg.mxu0
    %435 = vst.msk [vmem:[#allocation2 + $0xc] sm:$0x3] %vm289, %v433
    %v437 = vsel %vm291, %v433, 0
    %439 = vmatpush.msra.mxu0 0.0
    %440 = vmatpush.msra.mxu0 0.0
    %441 = vmatpush.msra.mxu0 0.0
    %442 = vmatpush.msra.mxu0 0.0
    %443 = vmatpush.msra.mxu0 0.0
    %444 = vmatpush.msra.mxu0 0.0
    %445 = vmatpush.msra.mxu0 0.0
    %446 = vmatpush.msra.mxu0 0.0
    %447 = vmatpush.msra.mxu0 0.0
    %448 = vmatpush.msra.mxu0 0.0
    %449 = vmatpush.msra.mxu0 0.0
    %450 = vmatpush.msra.mxu0 0.0
    %451 = vmatpush.msra.mxu0 0.0
    %452 = vmatpush.msra.mxu0 0.0
    %453 = vmatpush.msra.mxu0 0.0
    %454 = vmatpush.msra.mxu0 %v288
    %455 = vmatmul.f32.gmra.mxu0 %v437
    %v456 = vpop.f32.mrf.mxu0
    %v457 = vadd.f32 0.0, %v456
    %458 = vdwg.mxu0
    %459 = vst.msk [vmem:[#allocation2 + $0xe] sm:$0x3] %vm289, %v457
    %v461 = vsel %vm291, %v457, 0
    %463 = vmatpush.msra.mxu0 0.0
    %464 = vmatpush.msra.mxu0 0.0
    %465 = vmatpush.msra.mxu0 0.0
    %466 = vmatpush.msra.mxu0 0.0
    %467 = vmatpush.msra.mxu0 0.0
    %468 = vmatpush.msra.mxu0 0.0
    %469 = vmatpush.msra.mxu0 0.0
    %470 = vmatpush.msra.mxu0 0.0
    %471 = vmatpush.msra.mxu0 0.0
    %472 = vmatpush.msra.mxu0 0.0
    %473 = vmatpush.msra.mxu0 0.0
    %474 = vmatpush.msra.mxu0 0.0
    %475 = vmatpush.msra.mxu0 0.0
    %476 = vmatpush.msra.mxu0 0.0
    %477 = vmatpush.msra.mxu0 0.0
    %478 = vmatpush.msra.mxu0 %v288
    %479 = vmatmul.f32.gmra.mxu0 %v461
    %v480 = vpop.f32.mrf.mxu0
    %v481 = vadd.f32 0.0, %v480
    %482 = vdwg.mxu0
    %483 = vst.msk [vmem:[#allocation2 + $0x10] sm:$0x3] %vm289, %v481
    %v485 = vsel %vm291, %v481, 0
    %487 = vmatpush.msra.mxu0 0.0
    %488 = vmatpush.msra.mxu0 0.0
    %489 = vmatpush.msra.mxu0 0.0
    %490 = vmatpush.msra.mxu0 0.0
    %491 = vmatpush.msra.mxu0 0.0
    %492 = vmatpush.msra.mxu0 0.0
    %493 = vmatpush.msra.mxu0 0.0
    %494 = vmatpush.msra.mxu0 0.0
    %495 = vmatpush.msra.mxu0 0.0
    %496 = vmatpush.msra.mxu0 0.0
    %497 = vmatpush.msra.mxu0 0.0
    %498 = vmatpush.msra.mxu0 0.0
    %499 = vmatpush.msra.mxu0 0.0
    %500 = vmatpush.msra.mxu0 0.0
    %501 = vmatpush.msra.mxu0 0.0
    %502 = vmatpush.msra.mxu0 %v288
    %503 = vmatmul.f32.gmra.mxu0 %v485
    %v504 = vpop.f32.mrf.mxu0
    %v505 = vadd.f32 0.0, %v504
    %506 = vdwg.mxu0
    %507 = vst.msk [vmem:[#allocation2 + $0x12] sm:$0x3] %vm289, %v505
    %v509 = vsel %vm291, %v505, 0
    %511 = vmatpush.msra.mxu0 0.0
    %512 = vmatpush.msra.mxu0 0.0
    %513 = vmatpush.msra.mxu0 0.0
    %514 = vmatpush.msra.mxu0 0.0
    %515 = vmatpush.msra.mxu0 0.0
    %516 = vmatpush.msra.mxu0 0.0
    %517 = vmatpush.msra.mxu0 0.0
    %518 = vmatpush.msra.mxu0 0.0
    %519 = vmatpush.msra.mxu0 0.0
    %520 = vmatpush.msra.mxu0 0.0
    %521 = vmatpush.msra.mxu0 0.0
    %522 = vmatpush.msra.mxu0 0.0
    %523 = vmatpush.msra.mxu0 0.0
    %524 = vmatpush.msra.mxu0 0.0
    %525 = vmatpush.msra.mxu0 0.0
    %526 = vmatpush.msra.mxu0 %v288
    %527 = vmatmul.f32.gmra.mxu0 %v509
    %v528 = vpop.f32.mrf.mxu0
    %v529 = vadd.f32 0.0, %v528
    %530 = vdwg.mxu0
    %531 = vst.msk [vmem:[#allocation2 + $0x14] sm:$0x3] %vm289, %v529
    %v533 = vsel %vm291, %v529, 0
    %535 = vmatpush.msra.mxu0 0.0
    %536 = vmatpush.msra.mxu0 0.0
    %537 = vmatpush.msra.mxu0 0.0
    %538 = vmatpush.msra.mxu0 0.0
    %539 = vmatpush.msra.mxu0 0.0
    %540 = vmatpush.msra.mxu0 0.0
    %541 = vmatpush.msra.mxu0 0.0
    %542 = vmatpush.msra.mxu0 0.0
    %543 = vmatpush.msra.mxu0 0.0
    %544 = vmatpush.msra.mxu0 0.0
    %545 = vmatpush.msra.mxu0 0.0
    %546 = vmatpush.msra.mxu0 0.0
    %547 = vmatpush.msra.mxu0 0.0
    %548 = vmatpush.msra.mxu0 0.0
    %549 = vmatpush.msra.mxu0 0.0
    %550 = vmatpush.msra.mxu0 %v288
    %551 = vmatmul.f32.gmra.mxu0 %v533
    %v552 = vpop.f32.mrf.mxu0
    %v553 = vadd.f32 0.0, %v552
    %554 = vdwg.mxu0
    %555 = vst.msk [vmem:[#allocation2 + $0x16] sm:$0x3] %vm289, %v553
    %v557 = vsel %vm291, %v553, 0
    %559 = vmatpush.msra.mxu0 0.0
    %560 = vmatpush.msra.mxu0 0.0
    %561 = vmatpush.msra.mxu0 0.0
    %562 = vmatpush.msra.mxu0 0.0
    %563 = vmatpush.msra.mxu0 0.0
    %564 = vmatpush.msra.mxu0 0.0
    %565 = vmatpush.msra.mxu0 0.0
    %566 = vmatpush.msra.mxu0 0.0
    %567 = vmatpush.msra.mxu0 0.0
    %568 = vmatpush.msra.mxu0 0.0
    %569 = vmatpush.msra.mxu0 0.0
    %570 = vmatpush.msra.mxu0 0.0
    %571 = vmatpush.msra.mxu0 0.0
    %572 = vmatpush.msra.mxu0 0.0
    %573 = vmatpush.msra.mxu0 0.0
    %574 = vmatpush.msra.mxu0 %v288
    %575 = vmatmul.f32.gmra.mxu0 %v557
    %v576 = vpop.f32.mrf.mxu0
    %v577 = vadd.f32 0.0, %v576
    %578 = vdwg.mxu0
    %579 = vst.msk [vmem:[#allocation2 + $0x18] sm:$0x3] %vm289, %v577
    %v581 = vsel %vm291, %v577, 0
    %583 = vmatpush.msra.mxu0 0.0
    %584 = vmatpush.msra.mxu0 0.0
    %585 = vmatpush.msra.mxu0 0.0
    %586 = vmatpush.msra.mxu0 0.0
    %587 = vmatpush.msra.mxu0 0.0
    %588 = vmatpush.msra.mxu0 0.0
    %589 = vmatpush.msra.mxu0 0.0
    %590 = vmatpush.msra.mxu0 0.0
    %591 = vmatpush.msra.mxu0 0.0
    %592 = vmatpush.msra.mxu0 0.0
    %593 = vmatpush.msra.mxu0 0.0
    %594 = vmatpush.msra.mxu0 0.0
    %595 = vmatpush.msra.mxu0 0.0
    %596 = vmatpush.msra.mxu0 0.0
    %597 = vmatpush.msra.mxu0 0.0
    %598 = vmatpush.msra.mxu0 %v288
    %599 = vmatmul.f32.gmra.mxu0 %v581
    %v600 = vpop.f32.mrf.mxu0
    %v601 = vadd.f32 0.0, %v600
    %602 = vdwg.mxu0
    %603 = vst.msk [vmem:[#allocation2 + $0x1a] sm:$0x3] %vm289, %v601
    %v605 = vsel %vm291, %v601, 0
    %607 = vmatpush.msra.mxu0 0.0
    %608 = vmatpush.msra.mxu0 0.0
    %609 = vmatpush.msra.mxu0 0.0
    %610 = vmatpush.msra.mxu0 0.0
    %611 = vmatpush.msra.mxu0 0.0
    %612 = vmatpush.msra.mxu0 0.0
    %613 = vmatpush.msra.mxu0 0.0
    %614 = vmatpush.msra.mxu0 0.0
    %615 = vmatpush.msra.mxu0 0.0
    %616 = vmatpush.msra.mxu0 0.0
    %617 = vmatpush.msra.mxu0 0.0
    %618 = vmatpush.msra.mxu0 0.0
    %619 = vmatpush.msra.mxu0 0.0
    %620 = vmatpush.msra.mxu0 0.0
    %621 = vmatpush.msra.mxu0 0.0
    %622 = vmatpush.msra.mxu0 %v288
    %623 = vmatmul.f32.gmra.mxu0 %v605
    %v624 = vpop.f32.mrf.mxu0
    %v625 = vadd.f32 0.0, %v624
    %626 = vdwg.mxu0
    %627 = vst.msk [vmem:[#allocation2 + $0x1c] sm:$0x3] %vm289, %v625
    %v629 = vsel %vm291, %v625, 0
    %631 = vmatpush.msra.mxu0 0.0
    %632 = vmatpush.msra.mxu0 0.0
    %633 = vmatpush.msra.mxu0 0.0
    %634 = vmatpush.msra.mxu0 0.0
    %635 = vmatpush.msra.mxu0 0.0
    %636 = vmatpush.msra.mxu0 0.0
    %637 = vmatpush.msra.mxu0 0.0
    %638 = vmatpush.msra.mxu0 0.0
    %639 = vmatpush.msra.mxu0 0.0
    %640 = vmatpush.msra.mxu0 0.0
    %641 = vmatpush.msra.mxu0 0.0
    %642 = vmatpush.msra.mxu0 0.0
    %643 = vmatpush.msra.mxu0 0.0
    %644 = vmatpush.msra.mxu0 0.0
    %645 = vmatpush.msra.mxu0 0.0
    %646 = vmatpush.msra.mxu0 %v288
    %647 = vmatmul.f32.gmra.mxu0 %v629
    %v648 = vpop.f32.mrf.mxu0
    %v649 = vadd.f32 0.0, %v648
    %650 = vdwg.mxu0
    %651 = vst.msk [vmem:[#allocation2 + $0x1e] sm:$0x3] %vm289, %v649
    %v653 = vsel %vm291, %v649, 0
    %655 = vmatpush.msra.mxu0 0.0
    %656 = vmatpush.msra.mxu0 0.0
    %657 = vmatpush.msra.mxu0 0.0
    %658 = vmatpush.msra.mxu0 0.0
    %659 = vmatpush.msra.mxu0 0.0
    %660 = vmatpush.msra.mxu0 0.0
    %661 = vmatpush.msra.mxu0 0.0
    %662 = vmatpush.msra.mxu0 0.0
    %663 = vmatpush.msra.mxu0 0.0
    %664 = vmatpush.msra.mxu0 0.0
    %665 = vmatpush.msra.mxu0 0.0
    %666 = vmatpush.msra.mxu0 0.0
    %667 = vmatpush.msra.mxu0 0.0
    %668 = vmatpush.msra.mxu0 0.0
    %669 = vmatpush.msra.mxu0 0.0
    %670 = vmatpush.msra.mxu0 %v288
    %671 = vmatmul.f32.gmra.mxu0 %v653
    %v672 = vpop.f32.mrf.mxu0
    %v673 = vadd.f32 0.0, %v672
    %674 = vdwg.mxu0
    %675 = vst.msk [vmem:[#allocation2 + $0x20] sm:$0x3] %vm289, %v673
    %v677 = vsel %vm291, %v673, 0
    %679 = vmatpush.msra.mxu0 0.0
    %680 = vmatpush.msra.mxu0 0.0
    %681 = vmatpush.msra.mxu0 0.0
    %682 = vmatpush.msra.mxu0 0.0
    %683 = vmatpush.msra.mxu0 0.0
    %684 = vmatpush.msra.mxu0 0.0
    %685 = vmatpush.msra.mxu0 0.0
    %686 = vmatpush.msra.mxu0 0.0
    %687 = vmatpush.msra.mxu0 0.0
    %688 = vmatpush.msra.mxu0 0.0
    %689 = vmatpush.msra.mxu0 0.0
    %690 = vmatpush.msra.mxu0 0.0
    %691 = vmatpush.msra.mxu0 0.0
    %692 = vmatpush.msra.mxu0 0.0
    %693 = vmatpush.msra.mxu0 0.0
    %694 = vmatpush.msra.mxu0 %v288
    %695 = vmatmul.f32.gmra.mxu0 %v677
    %v696 = vpop.f32.mrf.mxu0
    %v697 = vadd.f32 0.0, %v696
    %698 = vdwg.mxu0
    %699 = vst.msk [vmem:[#allocation2 + $0x22] sm:$0x3] %vm289, %v697
    %v701 = vsel %vm291, %v697, 0
    %703 = vmatpush.msra.mxu0 0.0
    %704 = vmatpush.msra.mxu0 0.0
    %705 = vmatpush.msra.mxu0 0.0
    %706 = vmatpush.msra.mxu0 0.0
    %707 = vmatpush.msra.mxu0 0.0
    %708 = vmatpush.msra.mxu0 0.0
    %709 = vmatpush.msra.mxu0 0.0
    %710 = vmatpush.msra.mxu0 0.0
    %711 = vmatpush.msra.mxu0 0.0
    %712 = vmatpush.msra.mxu0 0.0
    %713 = vmatpush.msra.mxu0 0.0
    %714 = vmatpush.msra.mxu0 0.0
    %715 = vmatpush.msra.mxu0 0.0
    %716 = vmatpush.msra.mxu0 0.0
    %717 = vmatpush.msra.mxu0 0.0
    %718 = vmatpush.msra.mxu0 %v288
    %719 = vmatmul.f32.gmra.mxu0 %v701
    %v720 = vpop.f32.mrf.mxu0
    %v721 = vadd.f32 0.0, %v720
    %722 = vdwg.mxu0
    %723 = vst.msk [vmem:[#allocation2 + $0x24] sm:$0x3] %vm289, %v721
    %v725 = vsel %vm291, %v721, 0
    %727 = vmatpush.msra.mxu0 0.0
    %728 = vmatpush.msra.mxu0 0.0
    %729 = vmatpush.msra.mxu0 0.0
    %730 = vmatpush.msra.mxu0 0.0
    %731 = vmatpush.msra.mxu0 0.0
    %732 = vmatpush.msra.mxu0 0.0
    %733 = vmatpush.msra.mxu0 0.0
    %734 = vmatpush.msra.mxu0 0.0
    %735 = vmatpush.msra.mxu0 0.0
    %736 = vmatpush.msra.mxu0 0.0
    %737 = vmatpush.msra.mxu0 0.0
    %738 = vmatpush.msra.mxu0 0.0
    %739 = vmatpush.msra.mxu0 0.0
    %740 = vmatpush.msra.mxu0 0.0
    %741 = vmatpush.msra.mxu0 0.0
    %742 = vmatpush.msra.mxu0 %v288
    %743 = vmatmul.f32.gmra.mxu0 %v725
    %v744 = vpop.f32.mrf.mxu0
    %v745 = vadd.f32 0.0, %v744
    %746 = vdwg.mxu0
    %747 = vst.msk [vmem:[#allocation2 + $0x26] sm:$0x3] %vm289, %v745
    %v749 = vsel %vm291, %v745, 0
    %751 = vmatpush.msra.mxu0 0.0
    %752 = vmatpush.msra.mxu0 0.0
    %753 = vmatpush.msra.mxu0 0.0
    %754 = vmatpush.msra.mxu0 0.0
    %755 = vmatpush.msra.mxu0 0.0
    %756 = vmatpush.msra.mxu0 0.0
    %757 = vmatpush.msra.mxu0 0.0
    %758 = vmatpush.msra.mxu0 0.0
    %759 = vmatpush.msra.mxu0 0.0
    %760 = vmatpush.msra.mxu0 0.0
    %761 = vmatpush.msra.mxu0 0.0
    %762 = vmatpush.msra.mxu0 0.0
    %763 = vmatpush.msra.mxu0 0.0
    %764 = vmatpush.msra.mxu0 0.0
    %765 = vmatpush.msra.mxu0 0.0
    %766 = vmatpush.msra.mxu0 %v288
    %767 = vmatmul.f32.gmra.mxu0 %v749
    %v768 = vpop.f32.mrf.mxu0
    %v769 = vadd.f32 0.0, %v768
    %770 = vdwg.mxu0
    %771 = vst.msk [vmem:[#allocation2 + $0x28] sm:$0x3] %vm289, %v769
    %v773 = vsel %vm291, %v769, 0
    %775 = vmatpush.msra.mxu0 0.0
    %776 = vmatpush.msra.mxu0 0.0
    %777 = vmatpush.msra.mxu0 0.0
    %778 = vmatpush.msra.mxu0 0.0
    %779 = vmatpush.msra.mxu0 0.0
    %780 = vmatpush.msra.mxu0 0.0
    %781 = vmatpush.msra.mxu0 0.0
    %782 = vmatpush.msra.mxu0 0.0
    %783 = vmatpush.msra.mxu0 0.0
    %784 = vmatpush.msra.mxu0 0.0
    %785 = vmatpush.msra.mxu0 0.0
    %786 = vmatpush.msra.mxu0 0.0
    %787 = vmatpush.msra.mxu0 0.0
    %788 = vmatpush.msra.mxu0 0.0
    %789 = vmatpush.msra.mxu0 0.0
    %790 = vmatpush.msra.mxu0 %v288
    %791 = vmatmul.f32.gmra.mxu0 %v773
    %v792 = vpop.f32.mrf.mxu0
    %v793 = vadd.f32 0.0, %v792
    %794 = vdwg.mxu0
    %795 = vst.msk [vmem:[#allocation2 + $0x2a] sm:$0x3] %vm289, %v793
    %v797 = vsel %vm291, %v793, 0
    %799 = vmatpush.msra.mxu0 0.0
    %800 = vmatpush.msra.mxu0 0.0
    %801 = vmatpush.msra.mxu0 0.0
    %802 = vmatpush.msra.mxu0 0.0
    %803 = vmatpush.msra.mxu0 0.0
    %804 = vmatpush.msra.mxu0 0.0
    %805 = vmatpush.msra.mxu0 0.0
    %806 = vmatpush.msra.mxu0 0.0
    %807 = vmatpush.msra.mxu0 0.0
    %808 = vmatpush.msra.mxu0 0.0
    %809 = vmatpush.msra.mxu0 0.0
    %810 = vmatpush.msra.mxu0 0.0
    %811 = vmatpush.msra.mxu0 0.0
    %812 = vmatpush.msra.mxu0 0.0
    %813 = vmatpush.msra.mxu0 0.0
    %814 = vmatpush.msra.mxu0 %v288
    %815 = vmatmul.f32.gmra.mxu0 %v797
    %v816 = vpop.f32.mrf.mxu0
    %v817 = vadd.f32 0.0, %v816
    %818 = vdwg.mxu0
    %819 = vst.msk [vmem:[#allocation2 + $0x2c] sm:$0x3] %vm289, %v817
    %v821 = vsel %vm291, %v817, 0
    %823 = vmatpush.msra.mxu0 0.0
    %824 = vmatpush.msra.mxu0 0.0
    %825 = vmatpush.msra.mxu0 0.0
    %826 = vmatpush.msra.mxu0 0.0
    %827 = vmatpush.msra.mxu0 0.0
    %828 = vmatpush.msra.mxu0 0.0
    %829 = vmatpush.msra.mxu0 0.0
    %830 = vmatpush.msra.mxu0 0.0
    %831 = vmatpush.msra.mxu0 0.0
    %832 = vmatpush.msra.mxu0 0.0
    %833 = vmatpush.msra.mxu0 0.0
    %834 = vmatpush.msra.mxu0 0.0
    %835 = vmatpush.msra.mxu0 0.0
    %836 = vmatpush.msra.mxu0 0.0
    %837 = vmatpush.msra.mxu0 0.0
    %838 = vmatpush.msra.mxu0 %v288
    %839 = vmatmul.f32.gmra.mxu0 %v821
    %v840 = vpop.f32.mrf.mxu0
    %v841 = vadd.f32 0.0, %v840
    %842 = vdwg.mxu0
    %843 = vst.msk [vmem:[#allocation2 + $0x2e] sm:$0x3] %vm289, %v841
    %v845 = vsel %vm291, %v841, 0
    %847 = vmatpush.msra.mxu0 0.0
    %848 = vmatpush.msra.mxu0 0.0
    %849 = vmatpush.msra.mxu0 0.0
    %850 = vmatpush.msra.mxu0 0.0
    %851 = vmatpush.msra.mxu0 0.0
    %852 = vmatpush.msra.mxu0 0.0
    %853 = vmatpush.msra.mxu0 0.0
    %854 = vmatpush.msra.mxu0 0.0
    %855 = vmatpush.msra.mxu0 0.0
    %856 = vmatpush.msra.mxu0 0.0
    %857 = vmatpush.msra.mxu0 0.0
    %858 = vmatpush.msra.mxu0 0.0
    %859 = vmatpush.msra.mxu0 0.0
    %860 = vmatpush.msra.mxu0 0.0
    %861 = vmatpush.msra.mxu0 0.0
    %862 = vmatpush.msra.mxu0 %v288
    %863 = vmatmul.f32.gmra.mxu0 %v845
    %v864 = vpop.f32.mrf.mxu0
    %v865 = vadd.f32 0.0, %v864
    %866 = vdwg.mxu0
    %867 = vst.msk [vmem:[#allocation2 + $0x30] sm:$0x3] %vm289, %v865
    %v869 = vsel %vm291, %v865, 0
    %871 = vmatpush.msra.mxu0 0.0
    %872 = vmatpush.msra.mxu0 0.0
    %873 = vmatpush.msra.mxu0 0.0
    %874 = vmatpush.msra.mxu0 0.0
    %875 = vmatpush.msra.mxu0 0.0
    %876 = vmatpush.msra.mxu0 0.0
    %877 = vmatpush.msra.mxu0 0.0
    %878 = vmatpush.msra.mxu0 0.0
    %879 = vmatpush.msra.mxu0 0.0
    %880 = vmatpush.msra.mxu0 0.0
    %881 = vmatpush.msra.mxu0 0.0
    %882 = vmatpush.msra.mxu0 0.0
    %883 = vmatpush.msra.mxu0 0.0
    %884 = vmatpush.msra.mxu0 0.0
    %885 = vmatpush.msra.mxu0 0.0
    %886 = vmatpush.msra.mxu0 %v288
    %887 = vmatmul.f32.gmra.mxu0 %v869
    %v888 = vpop.f32.mrf.mxu0
    %v889 = vadd.f32 0.0, %v888
    %890 = vdwg.mxu0
    %891 = vst.msk [vmem:[#allocation2 + $0x32] sm:$0x3] %vm289, %v889
    %v893 = vsel %vm291, %v889, 0
    %895 = vmatpush.msra.mxu0 0.0
    %896 = vmatpush.msra.mxu0 0.0
    %897 = vmatpush.msra.mxu0 0.0
    %898 = vmatpush.msra.mxu0 0.0
    %899 = vmatpush.msra.mxu0 0.0
    %900 = vmatpush.msra.mxu0 0.0
    %901 = vmatpush.msra.mxu0 0.0
    %902 = vmatpush.msra.mxu0 0.0
    %903 = vmatpush.msra.mxu0 0.0
    %904 = vmatpush.msra.mxu0 0.0
    %905 = vmatpush.msra.mxu0 0.0
    %906 = vmatpush.msra.mxu0 0.0
    %907 = vmatpush.msra.mxu0 0.0
    %908 = vmatpush.msra.mxu0 0.0
    %909 = vmatpush.msra.mxu0 0.0
    %910 = vmatpush.msra.mxu0 %v288
    %911 = vmatmul.f32.gmra.mxu0 %v893
    %v912 = vpop.f32.mrf.mxu0
    %v913 = vadd.f32 0.0, %v912
    %914 = vdwg.mxu0
    %915 = vst.msk [vmem:[#allocation2 + $0x34] sm:$0x3] %vm289, %v913
    %v917 = vsel %vm291, %v913, 0
    %919 = vmatpush.msra.mxu0 0.0
    %920 = vmatpush.msra.mxu0 0.0
    %921 = vmatpush.msra.mxu0 0.0
    %922 = vmatpush.msra.mxu0 0.0
    %923 = vmatpush.msra.mxu0 0.0
    %924 = vmatpush.msra.mxu0 0.0
    %925 = vmatpush.msra.mxu0 0.0
    %926 = vmatpush.msra.mxu0 0.0
    %927 = vmatpush.msra.mxu0 0.0
    %928 = vmatpush.msra.mxu0 0.0
    %929 = vmatpush.msra.mxu0 0.0
    %930 = vmatpush.msra.mxu0 0.0
    %931 = vmatpush.msra.mxu0 0.0
    %932 = vmatpush.msra.mxu0 0.0
    %933 = vmatpush.msra.mxu0 0.0
    %934 = vmatpush.msra.mxu0 %v288
    %935 = vmatmul.f32.gmra.mxu0 %v917
    %v936 = vpop.f32.mrf.mxu0
    %v937 = vadd.f32 0.0, %v936
    %938 = vdwg.mxu0
    %939 = vst.msk [vmem:[#allocation2 + $0x36] sm:$0x3] %vm289, %v937
    %v941 = vsel %vm291, %v937, 0
    %943 = vmatpush.msra.mxu0 0.0
    %944 = vmatpush.msra.mxu0 0.0
    %945 = vmatpush.msra.mxu0 0.0
    %946 = vmatpush.msra.mxu0 0.0
    %947 = vmatpush.msra.mxu0 0.0
    %948 = vmatpush.msra.mxu0 0.0
    %949 = vmatpush.msra.mxu0 0.0
    %950 = vmatpush.msra.mxu0 0.0
    %951 = vmatpush.msra.mxu0 0.0
    %952 = vmatpush.msra.mxu0 0.0
    %953 = vmatpush.msra.mxu0 0.0
    %954 = vmatpush.msra.mxu0 0.0
    %955 = vmatpush.msra.mxu0 0.0
    %956 = vmatpush.msra.mxu0 0.0
    %957 = vmatpush.msra.mxu0 0.0
    %958 = vmatpush.msra.mxu0 %v288
    %959 = vmatmul.f32.gmra.mxu0 %v941
    %v960 = vpop.f32.mrf.mxu0
    %v961 = vadd.f32 0.0, %v960
    %962 = vdwg.mxu0
    %963 = vst.msk [vmem:[#allocation2 + $0x38] sm:$0x3] %vm289, %v961
    %v965 = vsel %vm291, %v961, 0
    %967 = vmatpush.msra.mxu0 0.0
    %968 = vmatpush.msra.mxu0 0.0
    %969 = vmatpush.msra.mxu0 0.0
    %970 = vmatpush.msra.mxu0 0.0
    %971 = vmatpush.msra.mxu0 0.0
    %972 = vmatpush.msra.mxu0 0.0
    %973 = vmatpush.msra.mxu0 0.0
    %974 = vmatpush.msra.mxu0 0.0
    %975 = vmatpush.msra.mxu0 0.0
    %976 = vmatpush.msra.mxu0 0.0
    %977 = vmatpush.msra.mxu0 0.0
    %978 = vmatpush.msra.mxu0 0.0
    %979 = vmatpush.msra.mxu0 0.0
    %980 = vmatpush.msra.mxu0 0.0
    %981 = vmatpush.msra.mxu0 0.0
    %982 = vmatpush.msra.mxu0 %v288
    %983 = vmatmul.f32.gmra.mxu0 %v965
    %v984 = vpop.f32.mrf.mxu0
    %v985 = vadd.f32 0.0, %v984
    %986 = vdwg.mxu0
    %987 = vst.msk [vmem:[#allocation2 + $0x3a] sm:$0x3] %vm289, %v985
    %v989 = vsel %vm291, %v985, 0
    %991 = vmatpush.msra.mxu0 0.0
    %992 = vmatpush.msra.mxu0 0.0
    %993 = vmatpush.msra.mxu0 0.0
    %994 = vmatpush.msra.mxu0 0.0
    %995 = vmatpush.msra.mxu0 0.0
    %996 = vmatpush.msra.mxu0 0.0
    %997 = vmatpush.msra.mxu0 0.0
    %998 = vmatpush.msra.mxu0 0.0
    %999 = vmatpush.msra.mxu0 0.0
    %1000 = vmatpush.msra.mxu0 0.0
    %1001 = vmatpush.msra.mxu0 0.0
    %1002 = vmatpush.msra.mxu0 0.0
    %1003 = vmatpush.msra.mxu0 0.0
    %1004 = vmatpush.msra.mxu0 0.0
    %1005 = vmatpush.msra.mxu0 0.0
    %1006 = vmatpush.msra.mxu0 %v288
    %1007 = vmatmul.f32.gmra.mxu0 %v989
    %v1008 = vpop.f32.mrf.mxu0
    %v1009 = vadd.f32 0.0, %v1008
    %1010 = vdwg.mxu0
    %1011 = vst.msk [vmem:[#allocation2 + $0x3c] sm:$0x3] %vm289, %v1009
    %v1013 = vsel %vm291, %v1009, 0
    %1015 = vmatpush.msra.mxu0 0.0
    %1016 = vmatpush.msra.mxu0 0.0
    %1017 = vmatpush.msra.mxu0 0.0
    %1018 = vmatpush.msra.mxu0 0.0
    %1019 = vmatpush.msra.mxu0 0.0
    %1020 = vmatpush.msra.mxu0 0.0
    %1021 = vmatpush.msra.mxu0 0.0
    %1022 = vmatpush.msra.mxu0 0.0
    %1023 = vmatpush.msra.mxu0 0.0
    %1024 = vmatpush.msra.mxu0 0.0
    %1025 = vmatpush.msra.mxu0 0.0
    %1026 = vmatpush.msra.mxu0 0.0
    %1027 = vmatpush.msra.mxu0 0.0
    %1028 = vmatpush.msra.mxu0 0.0
    %1029 = vmatpush.msra.mxu0 0.0
    %1030 = vmatpush.msra.mxu0 %v288
    %1031 = vmatmul.f32.gmra.mxu0 %v1013
    %v1032 = vpop.f32.mrf.mxu0
    %v1033 = vadd.f32 0.0, %v1032
    %1034 = vdwg.mxu0
    %1035 = vst.msk [vmem:[#allocation2 + $0x3e] sm:$0x3] %vm289, %v1033
    %v1037 = vsel %vm291, %v1033, 0
    %1039 = vmatpush.msra.mxu0 0.0
    %1040 = vmatpush.msra.mxu0 0.0
    %1041 = vmatpush.msra.mxu0 0.0
    %1042 = vmatpush.msra.mxu0 0.0
    %1043 = vmatpush.msra.mxu0 0.0
    %1044 = vmatpush.msra.mxu0 0.0
    %1045 = vmatpush.msra.mxu0 0.0
    %1046 = vmatpush.msra.mxu0 0.0
    %1047 = vmatpush.msra.mxu0 0.0
    %1048 = vmatpush.msra.mxu0 0.0
    %1049 = vmatpush.msra.mxu0 0.0
    %1050 = vmatpush.msra.mxu0 0.0
    %1051 = vmatpush.msra.mxu0 0.0
    %1052 = vmatpush.msra.mxu0 0.0
    %1053 = vmatpush.msra.mxu0 0.0
    %1054 = vmatpush.msra.mxu0 %v288
    %1055 = vmatmul.f32.gmra.mxu0 %v1037
    %v1056 = vpop.f32.mrf.mxu0
    %v1057 = vadd.f32 0.0, %v1056
    %1058 = vdwg.mxu0
    %1059 = vst.msk [vmem:[#allocation2 + $0x40] sm:$0x3] %vm289, %v1057
    %v1061 = vsel %vm291, %v1057, 0
    %1063 = vmatpush.msra.mxu0 0.0
    %1064 = vmatpush.msra.mxu0 0.0
    %1065 = vmatpush.msra.mxu0 0.0
    %1066 = vmatpush.msra.mxu0 0.0
    %1067 = vmatpush.msra.mxu0 0.0
    %1068 = vmatpush.msra.mxu0 0.0
    %1069 = vmatpush.msra.mxu0 0.0
    %1070 = vmatpush.msra.mxu0 0.0
    %1071 = vmatpush.msra.mxu0 0.0
    %1072 = vmatpush.msra.mxu0 0.0
    %1073 = vmatpush.msra.mxu0 0.0
    %1074 = vmatpush.msra.mxu0 0.0
    %1075 = vmatpush.msra.mxu0 0.0
    %1076 = vmatpush.msra.mxu0 0.0
    %1077 = vmatpush.msra.mxu0 0.0
    %1078 = vmatpush.msra.mxu0 %v288
    %1079 = vmatmul.f32.gmra.mxu0 %v1061
    %v1080 = vpop.f32.mrf.mxu0
    %v1081 = vadd.f32 0.0, %v1080
    %1082 = vdwg.mxu0
    %1083 = vst.msk [vmem:[#allocation2 + $0x42] sm:$0x3] %vm289, %v1081
    %v1085 = vsel %vm291, %v1081, 0
    %1087 = vmatpush.msra.mxu0 0.0
    %1088 = vmatpush.msra.mxu0 0.0
    %1089 = vmatpush.msra.mxu0 0.0
    %1090 = vmatpush.msra.mxu0 0.0
    %1091 = vmatpush.msra.mxu0 0.0
    %1092 = vmatpush.msra.mxu0 0.0
    %1093 = vmatpush.msra.mxu0 0.0
    %1094 = vmatpush.msra.mxu0 0.0
    %1095 = vmatpush.msra.mxu0 0.0
    %1096 = vmatpush.msra.mxu0 0.0
    %1097 = vmatpush.msra.mxu0 0.0
    %1098 = vmatpush.msra.mxu0 0.0
    %1099 = vmatpush.msra.mxu0 0.0
    %1100 = vmatpush.msra.mxu0 0.0
    %1101 = vmatpush.msra.mxu0 0.0
    %1102 = vmatpush.msra.mxu0 %v288
    %1103 = vmatmul.f32.gmra.mxu0 %v1085
    %v1104 = vpop.f32.mrf.mxu0
    %v1105 = vadd.f32 0.0, %v1104
    %1106 = vdwg.mxu0
    %1107 = vst.msk [vmem:[#allocation2 + $0x44] sm:$0x3] %vm289, %v1105
    %v1109 = vsel %vm291, %v1105, 0
    %1111 = vmatpush.msra.mxu0 0.0
    %1112 = vmatpush.msra.mxu0 0.0
    %1113 = vmatpush.msra.mxu0 0.0
    %1114 = vmatpush.msra.mxu0 0.0
    %1115 = vmatpush.msra.mxu0 0.0
    %1116 = vmatpush.msra.mxu0 0.0
    %1117 = vmatpush.msra.mxu0 0.0
    %1118 = vmatpush.msra.mxu0 0.0
    %1119 = vmatpush.msra.mxu0 0.0
    %1120 = vmatpush.msra.mxu0 0.0
    %1121 = vmatpush.msra.mxu0 0.0
    %1122 = vmatpush.msra.mxu0 0.0
    %1123 = vmatpush.msra.mxu0 0.0
    %1124 = vmatpush.msra.mxu0 0.0
    %1125 = vmatpush.msra.mxu0 0.0
    %1126 = vmatpush.msra.mxu0 %v288
    %1127 = vmatmul.f32.gmra.mxu0 %v1109
    %v1128 = vpop.f32.mrf.mxu0
    %v1129 = vadd.f32 0.0, %v1128
    %1130 = vdwg.mxu0
    %1131 = vst.msk [vmem:[#allocation2 + $0x46] sm:$0x3] %vm289, %v1129
    %v1133 = vsel %vm291, %v1129, 0
    %1135 = vmatpush.msra.mxu0 0.0
    %1136 = vmatpush.msra.mxu0 0.0
    %1137 = vmatpush.msra.mxu0 0.0
    %1138 = vmatpush.msra.mxu0 0.0
    %1139 = vmatpush.msra.mxu0 0.0
    %1140 = vmatpush.msra.mxu0 0.0
    %1141 = vmatpush.msra.mxu0 0.0
    %1142 = vmatpush.msra.mxu0 0.0
    %1143 = vmatpush.msra.mxu0 0.0
    %1144 = vmatpush.msra.mxu0 0.0
    %1145 = vmatpush.msra.mxu0 0.0
    %1146 = vmatpush.msra.mxu0 0.0
    %1147 = vmatpush.msra.mxu0 0.0
    %1148 = vmatpush.msra.mxu0 0.0
    %1149 = vmatpush.msra.mxu0 0.0
    %1150 = vmatpush.msra.mxu0 %v288
    %1151 = vmatmul.f32.gmra.mxu0 %v1133
    %v1152 = vpop.f32.mrf.mxu0
    %v1153 = vadd.f32 0.0, %v1152
    %1154 = vdwg.mxu0
    %1155 = vst.msk [vmem:[#allocation2 + $0x48] sm:$0x3] %vm289, %v1153
    %v1157 = vsel %vm291, %v1153, 0
    %1159 = vmatpush.msra.mxu0 0.0
    %1160 = vmatpush.msra.mxu0 0.0
    %1161 = vmatpush.msra.mxu0 0.0
    %1162 = vmatpush.msra.mxu0 0.0
    %1163 = vmatpush.msra.mxu0 0.0
    %1164 = vmatpush.msra.mxu0 0.0
    %1165 = vmatpush.msra.mxu0 0.0
    %1166 = vmatpush.msra.mxu0 0.0
    %1167 = vmatpush.msra.mxu0 0.0
    %1168 = vmatpush.msra.mxu0 0.0
    %1169 = vmatpush.msra.mxu0 0.0
    %1170 = vmatpush.msra.mxu0 0.0
    %1171 = vmatpush.msra.mxu0 0.0
    %1172 = vmatpush.msra.mxu0 0.0
    %1173 = vmatpush.msra.mxu0 0.0
    %1174 = vmatpush.msra.mxu0 %v288
    %1175 = vmatmul.f32.gmra.mxu0 %v1157
    %v1176 = vpop.f32.mrf.mxu0
    %v1177 = vadd.f32 0.0, %v1176
    %1178 = vdwg.mxu0
    %1179 = vst.msk [vmem:[#allocation2 + $0x4a] sm:$0x3] %vm289, %v1177
    %v1181 = vsel %vm291, %v1177, 0
    %1183 = vmatpush.msra.mxu0 0.0
    %1184 = vmatpush.msra.mxu0 0.0
    %1185 = vmatpush.msra.mxu0 0.0
    %1186 = vmatpush.msra.mxu0 0.0
    %1187 = vmatpush.msra.mxu0 0.0
    %1188 = vmatpush.msra.mxu0 0.0
    %1189 = vmatpush.msra.mxu0 0.0
    %1190 = vmatpush.msra.mxu0 0.0
    %1191 = vmatpush.msra.mxu0 0.0
    %1192 = vmatpush.msra.mxu0 0.0
    %1193 = vmatpush.msra.mxu0 0.0
    %1194 = vmatpush.msra.mxu0 0.0
    %1195 = vmatpush.msra.mxu0 0.0
    %1196 = vmatpush.msra.mxu0 0.0
    %1197 = vmatpush.msra.mxu0 0.0
    %1198 = vmatpush.msra.mxu0 %v288
    %1199 = vmatmul.f32.gmra.mxu0 %v1181
    %v1200 = vpop.f32.mrf.mxu0
    %v1201 = vadd.f32 0.0, %v1200
    %1202 = vdwg.mxu0
    %1203 = vst.msk [vmem:[#allocation2 + $0x4c] sm:$0x3] %vm289, %v1201
    %v1205 = vsel %vm291, %v1201, 0
    %1207 = vmatpush.msra.mxu0 0.0
    %1208 = vmatpush.msra.mxu0 0.0
    %1209 = vmatpush.msra.mxu0 0.0
    %1210 = vmatpush.msra.mxu0 0.0
    %1211 = vmatpush.msra.mxu0 0.0
    %1212 = vmatpush.msra.mxu0 0.0
    %1213 = vmatpush.msra.mxu0 0.0
    %1214 = vmatpush.msra.mxu0 0.0
    %1215 = vmatpush.msra.mxu0 0.0
    %1216 = vmatpush.msra.mxu0 0.0
    %1217 = vmatpush.msra.mxu0 0.0
    %1218 = vmatpush.msra.mxu0 0.0
    %1219 = vmatpush.msra.mxu0 0.0
    %1220 = vmatpush.msra.mxu0 0.0
    %1221 = vmatpush.msra.mxu0 0.0
    %1222 = vmatpush.msra.mxu0 %v288
    %1223 = vmatmul.f32.gmra.mxu0 %v1205
    %v1224 = vpop.f32.mrf.mxu0
    %v1225 = vadd.f32 0.0, %v1224
    %1226 = vdwg.mxu0
    %1227 = vst.msk [vmem:[#allocation2 + $0x4e] sm:$0x3] %vm289, %v1225
    %v1229 = vsel %vm291, %v1225, 0
    %1231 = vmatpush.msra.mxu0 0.0
    %1232 = vmatpush.msra.mxu0 0.0
    %1233 = vmatpush.msra.mxu0 0.0
    %1234 = vmatpush.msra.mxu0 0.0
    %1235 = vmatpush.msra.mxu0 0.0
    %1236 = vmatpush.msra.mxu0 0.0
    %1237 = vmatpush.msra.mxu0 0.0
    %1238 = vmatpush.msra.mxu0 0.0
    %1239 = vmatpush.msra.mxu0 0.0
    %1240 = vmatpush.msra.mxu0 0.0
    %1241 = vmatpush.msra.mxu0 0.0
    %1242 = vmatpush.msra.mxu0 0.0
    %1243 = vmatpush.msra.mxu0 0.0
    %1244 = vmatpush.msra.mxu0 0.0
    %1245 = vmatpush.msra.mxu0 0.0
    %1246 = vmatpush.msra.mxu0 %v288
    %1247 = vmatmul.f32.gmra.mxu0 %v1229
    %v1248 = vpop.f32.mrf.mxu0
    %v1249 = vadd.f32 0.0, %v1248
    %1250 = vdwg.mxu0
    %1251 = vst.msk [vmem:[#allocation2 + $0x50] sm:$0x3] %vm289, %v1249
    %v1253 = vsel %vm291, %v1249, 0
    %1255 = vmatpush.msra.mxu0 0.0
    %1256 = vmatpush.msra.mxu0 0.0
    %1257 = vmatpush.msra.mxu0 0.0
    %1258 = vmatpush.msra.mxu0 0.0
    %1259 = vmatpush.msra.mxu0 0.0
    %1260 = vmatpush.msra.mxu0 0.0
    %1261 = vmatpush.msra.mxu0 0.0
    %1262 = vmatpush.msra.mxu0 0.0
    %1263 = vmatpush.msra.mxu0 0.0
    %1264 = vmatpush.msra.mxu0 0.0
    %1265 = vmatpush.msra.mxu0 0.0
    %1266 = vmatpush.msra.mxu0 0.0
    %1267 = vmatpush.msra.mxu0 0.0
    %1268 = vmatpush.msra.mxu0 0.0
    %1269 = vmatpush.msra.mxu0 0.0
    %1270 = vmatpush.msra.mxu0 %v288
    %1271 = vmatmul.f32.gmra.mxu0 %v1253
    %v1272 = vpop.f32.mrf.mxu0
    %v1273 = vadd.f32 0.0, %v1272
    %1274 = vdwg.mxu0
    %1275 = vst.msk [vmem:[#allocation2 + $0x52] sm:$0x3] %vm289, %v1273
    %v1277 = vsel %vm291, %v1273, 0
    %1279 = vmatpush.msra.mxu0 0.0
    %1280 = vmatpush.msra.mxu0 0.0
    %1281 = vmatpush.msra.mxu0 0.0
    %1282 = vmatpush.msra.mxu0 0.0
    %1283 = vmatpush.msra.mxu0 0.0
    %1284 = vmatpush.msra.mxu0 0.0
    %1285 = vmatpush.msra.mxu0 0.0
    %1286 = vmatpush.msra.mxu0 0.0
    %1287 = vmatpush.msra.mxu0 0.0
    %1288 = vmatpush.msra.mxu0 0.0
    %1289 = vmatpush.msra.mxu0 0.0
    %1290 = vmatpush.msra.mxu0 0.0
    %1291 = vmatpush.msra.mxu0 0.0
    %1292 = vmatpush.msra.mxu0 0.0
    %1293 = vmatpush.msra.mxu0 0.0
    %1294 = vmatpush.msra.mxu0 %v288
    %1295 = vmatmul.f32.gmra.mxu0 %v1277
    %v1296 = vpop.f32.mrf.mxu0
    %v1297 = vadd.f32 0.0, %v1296
    %1298 = vdwg.mxu0
    %1299 = vst.msk [vmem:[#allocation2 + $0x54] sm:$0x3] %vm289, %v1297
    %v1301 = vsel %vm291, %v1297, 0
    %1303 = vmatpush.msra.mxu0 0.0
    %1304 = vmatpush.msra.mxu0 0.0
    %1305 = vmatpush.msra.mxu0 0.0
    %1306 = vmatpush.msra.mxu0 0.0
    %1307 = vmatpush.msra.mxu0 0.0
    %1308 = vmatpush.msra.mxu0 0.0
    %1309 = vmatpush.msra.mxu0 0.0
    %1310 = vmatpush.msra.mxu0 0.0
    %1311 = vmatpush.msra.mxu0 0.0
    %1312 = vmatpush.msra.mxu0 0.0
    %1313 = vmatpush.msra.mxu0 0.0
    %1314 = vmatpush.msra.mxu0 0.0
    %1315 = vmatpush.msra.mxu0 0.0
    %1316 = vmatpush.msra.mxu0 0.0
    %1317 = vmatpush.msra.mxu0 0.0
    %1318 = vmatpush.msra.mxu0 %v288
    %1319 = vmatmul.f32.gmra.mxu0 %v1301
    %v1320 = vpop.f32.mrf.mxu0
    %v1321 = vadd.f32 0.0, %v1320
    %1322 = vdwg.mxu0
    %1323 = vst.msk [vmem:[#allocation2 + $0x56] sm:$0x3] %vm289, %v1321
    %v1325 = vsel %vm291, %v1321, 0
    %1327 = vmatpush.msra.mxu0 0.0
    %1328 = vmatpush.msra.mxu0 0.0
    %1329 = vmatpush.msra.mxu0 0.0
    %1330 = vmatpush.msra.mxu0 0.0
    %1331 = vmatpush.msra.mxu0 0.0
    %1332 = vmatpush.msra.mxu0 0.0
    %1333 = vmatpush.msra.mxu0 0.0
    %1334 = vmatpush.msra.mxu0 0.0
    %1335 = vmatpush.msra.mxu0 0.0
    %1336 = vmatpush.msra.mxu0 0.0
    %1337 = vmatpush.msra.mxu0 0.0
    %1338 = vmatpush.msra.mxu0 0.0
    %1339 = vmatpush.msra.mxu0 0.0
    %1340 = vmatpush.msra.mxu0 0.0
    %1341 = vmatpush.msra.mxu0 0.0
    %1342 = vmatpush.msra.mxu0 %v288
    %1343 = vmatmul.f32.gmra.mxu0 %v1325
    %v1344 = vpop.f32.mrf.mxu0
    %v1345 = vadd.f32 0.0, %v1344
    %1346 = vdwg.mxu0
    %1347 = vst.msk [vmem:[#allocation2 + $0x58] sm:$0x3] %vm289, %v1345
    %v1349 = vsel %vm291, %v1345, 0
    %1351 = vmatpush.msra.mxu0 0.0
    %1352 = vmatpush.msra.mxu0 0.0
    %1353 = vmatpush.msra.mxu0 0.0
    %1354 = vmatpush.msra.mxu0 0.0
    %1355 = vmatpush.msra.mxu0 0.0
    %1356 = vmatpush.msra.mxu0 0.0
    %1357 = vmatpush.msra.mxu0 0.0
    %1358 = vmatpush.msra.mxu0 0.0
    %1359 = vmatpush.msra.mxu0 0.0
    %1360 = vmatpush.msra.mxu0 0.0
    %1361 = vmatpush.msra.mxu0 0.0
    %1362 = vmatpush.msra.mxu0 0.0
    %1363 = vmatpush.msra.mxu0 0.0
    %1364 = vmatpush.msra.mxu0 0.0
    %1365 = vmatpush.msra.mxu0 0.0
    %1366 = vmatpush.msra.mxu0 %v288
    %1367 = vmatmul.f32.gmra.mxu0 %v1349
    %v1368 = vpop.f32.mrf.mxu0
    %v1369 = vadd.f32 0.0, %v1368
    %1370 = vdwg.mxu0
    %1371 = vst.msk [vmem:[#allocation2 + $0x5a] sm:$0x3] %vm289, %v1369
    %v1373 = vsel %vm291, %v1369, 0
    %1375 = vmatpush.msra.mxu0 0.0
    %1376 = vmatpush.msra.mxu0 0.0
    %1377 = vmatpush.msra.mxu0 0.0
    %1378 = vmatpush.msra.mxu0 0.0
    %1379 = vmatpush.msra.mxu0 0.0
    %1380 = vmatpush.msra.mxu0 0.0
    %1381 = vmatpush.msra.mxu0 0.0
    %1382 = vmatpush.msra.mxu0 0.0
    %1383 = vmatpush.msra.mxu0 0.0
    %1384 = vmatpush.msra.mxu0 0.0
    %1385 = vmatpush.msra.mxu0 0.0
    %1386 = vmatpush.msra.mxu0 0.0
    %1387 = vmatpush.msra.mxu0 0.0
    %1388 = vmatpush.msra.mxu0 0.0
    %1389 = vmatpush.msra.mxu0 0.0
    %1390 = vmatpush.msra.mxu0 %v288
    %1391 = vmatmul.f32.gmra.mxu0 %v1373
    %v1392 = vpop.f32.mrf.mxu0
    %v1393 = vadd.f32 0.0, %v1392
    %1394 = vdwg.mxu0
    %1395 = vst.msk [vmem:[#allocation2 + $0x5c] sm:$0x3] %vm289, %v1393
    %v1397 = vsel %vm291, %v1393, 0
    %1399 = vmatpush.msra.mxu0 0.0
    %1400 = vmatpush.msra.mxu0 0.0
    %1401 = vmatpush.msra.mxu0 0.0
    %1402 = vmatpush.msra.mxu0 0.0
    %1403 = vmatpush.msra.mxu0 0.0
    %1404 = vmatpush.msra.mxu0 0.0
    %1405 = vmatpush.msra.mxu0 0.0
    %1406 = vmatpush.msra.mxu0 0.0
    %1407 = vmatpush.msra.mxu0 0.0
    %1408 = vmatpush.msra.mxu0 0.0
    %1409 = vmatpush.msra.mxu0 0.0
    %1410 = vmatpush.msra.mxu0 0.0
    %1411 = vmatpush.msra.mxu0 0.0
    %1412 = vmatpush.msra.mxu0 0.0
    %1413 = vmatpush.msra.mxu0 0.0
    %1414 = vmatpush.msra.mxu0 %v288
    %1415 = vmatmul.f32.gmra.mxu0 %v1397
    %v1416 = vpop.f32.mrf.mxu0
    %v1417 = vadd.f32 0.0, %v1416
    %1418 = vdwg.mxu0
    %1419 = vst.msk [vmem:[#allocation2 + $0x5e] sm:$0x3] %vm289, %v1417
    %v1421 = vsel %vm291, %v1417, 0
    %1423 = vmatpush.msra.mxu0 0.0
    %1424 = vmatpush.msra.mxu0 0.0
    %1425 = vmatpush.msra.mxu0 0.0
    %1426 = vmatpush.msra.mxu0 0.0
    %1427 = vmatpush.msra.mxu0 0.0
    %1428 = vmatpush.msra.mxu0 0.0
    %1429 = vmatpush.msra.mxu0 0.0
    %1430 = vmatpush.msra.mxu0 0.0
    %1431 = vmatpush.msra.mxu0 0.0
    %1432 = vmatpush.msra.mxu0 0.0
    %1433 = vmatpush.msra.mxu0 0.0
    %1434 = vmatpush.msra.mxu0 0.0
    %1435 = vmatpush.msra.mxu0 0.0
    %1436 = vmatpush.msra.mxu0 0.0
    %1437 = vmatpush.msra.mxu0 0.0
    %1438 = vmatpush.msra.mxu0 %v288
    %1439 = vmatmul.f32.gmra.mxu0 %v1421
    %v1440 = vpop.f32.mrf.mxu0
    %v1441 = vadd.f32 0.0, %v1440
    %1442 = vdwg.mxu0
    %1443 = vst.msk [vmem:[#allocation2 + $0x60] sm:$0x3] %vm289, %v1441
    %v1445 = vsel %vm291, %v1441, 0
    %1447 = vmatpush.msra.mxu0 0.0
    %1448 = vmatpush.msra.mxu0 0.0
    %1449 = vmatpush.msra.mxu0 0.0
    %1450 = vmatpush.msra.mxu0 0.0
    %1451 = vmatpush.msra.mxu0 0.0
    %1452 = vmatpush.msra.mxu0 0.0
    %1453 = vmatpush.msra.mxu0 0.0
    %1454 = vmatpush.msra.mxu0 0.0
    %1455 = vmatpush.msra.mxu0 0.0
    %1456 = vmatpush.msra.mxu0 0.0
    %1457 = vmatpush.msra.mxu0 0.0
    %1458 = vmatpush.msra.mxu0 0.0
    %1459 = vmatpush.msra.mxu0 0.0
    %1460 = vmatpush.msra.mxu0 0.0
    %1461 = vmatpush.msra.mxu0 0.0
    %1462 = vmatpush.msra.mxu0 %v288
    %1463 = vmatmul.f32.gmra.mxu0 %v1445
    %v1464 = vpop.f32.mrf.mxu0
    %v1465 = vadd.f32 0.0, %v1464
    %1466 = vdwg.mxu0
    %1467 = vst.msk [vmem:[#allocation2 + $0x62] sm:$0x3] %vm289, %v1465
    %v1468 = vld [vmem:[#allocation2] sm:$0xff]
    %v1469 = vld [vmem:[#allocation2 + $0x8] sm:$0xff]
    %v1470 = vld [vmem:[#allocation2 + $0x10] sm:$0xff]
    %v1471 = vld [vmem:[#allocation2 + $0x18] sm:$0xff]
    %v1472 = vld [vmem:[#allocation2 + $0x20] sm:$0xff]
    %v1473 = vld [vmem:[#allocation2 + $0x28] sm:$0xff]
    %v1474 = vld [vmem:[#allocation2 + $0x30] sm:$0xff]
    %v1475 = vld [vmem:[#allocation2 + $0x38] sm:$0xff]
    %v1476 = vld [vmem:[#allocation2 + $0x40] sm:$0xff]
    %v1477 = vld [vmem:[#allocation2 + $0x48] sm:$0xff]
    %v1478 = vld [vmem:[#allocation2 + $0x50] sm:$0xff]
    %v1479 = vld [vmem:[#allocation2 + $0x58] sm:$0xff]
    %v1480 = vld [vmem:[#allocation2 + $0x60] sm:$0xf]
    %v1481 = vld [vmem:[%s10] sm:$0xff]
    %v1482 = vld [vmem:[%s14] sm:$0x1]
    %v1484 = vperm.slane %v1482, 0
    %v1487 = vsel %vm291, %v1468, 0
    %v1490 = vsel %vm291, %v1469, 0
    %v1493 = vsel %vm291, %v1470, 0
    %v1496 = vsel %vm291, %v1471, 0
    %v1499 = vsel %vm291, %v1472, 0
    %v1502 = vsel %vm291, %v1473, 0
    %v1505 = vsel %vm291, %v1474, 0
    %v1508 = vsel %vm291, %v1475, 0
    %v1511 = vsel %vm291, %v1476, 0
    %v1514 = vsel %vm291, %v1477, 0
    %v1517 = vsel %vm291, %v1478, 0
    %v1520 = vsel %vm291, %v1479, 0
    %v1523 = vsel %vm291, %v1480, 0
    %1525 = vmatpush.msra.mxu0 0.0
    %1526 = vmatpush.msra.mxu0 0.0
    %1527 = vmatpush.msra.mxu0 0.0
    %1528 = vmatpush.msra.mxu0 0.0
    %1529 = vmatpush.msra.mxu0 0.0
    %1530 = vmatpush.msra.mxu0 0.0
    %1531 = vmatpush.msra.mxu0 0.0
    %1532 = vmatpush.msra.mxu0 0.0
    %1533 = vmatpush.msra.mxu0 0.0
    %1534 = vmatpush.msra.mxu0 0.0
    %1535 = vmatpush.msra.mxu0 0.0
    %1536 = vmatpush.msra.mxu0 0.0
    %1537 = vmatpush.msra.mxu0 0.0
    %1538 = vmatpush.msra.mxu0 0.0
    %1539 = vmatpush.msra.mxu0 0.0
    %1540 = vmatpush.msra.mxu0 %v1481
    %1541 = vmatmul.f32.gmra.mxu0 %v1487
    %v1542 = vpop.f32.mrf.mxu0
    %v1543 = vadd.f32 %v1484, %v1542
    %1544 = vmatmul.f32.gmra.mxu0 %v1490
    %v1545 = vpop.f32.mrf.mxu0
    %v1546 = vadd.f32 %v1484, %v1545
    %1547 = vmatmul.f32.gmra.mxu0 %v1493
    %v1548 = vpop.f32.mrf.mxu0
    %v1549 = vadd.f32 %v1484, %v1548
    %1550 = vmatmul.f32.gmra.mxu0 %v1496
    %v1551 = vpop.f32.mrf.mxu0
    %v1552 = vadd.f32 %v1484, %v1551
    %1553 = vmatmul.f32.gmra.mxu0 %v1499
    %v1554 = vpop.f32.mrf.mxu0
    %v1555 = vadd.f32 %v1484, %v1554
    %1556 = vmatmul.f32.gmra.mxu0 %v1502
    %v1557 = vpop.f32.mrf.mxu0
    %v1558 = vadd.f32 %v1484, %v1557
    %1559 = vmatmul.f32.gmra.mxu0 %v1505
    %v1560 = vpop.f32.mrf.mxu0
    %v1561 = vadd.f32 %v1484, %v1560
    %1562 = vmatmul.f32.gmra.mxu0 %v1508
    %v1563 = vpop.f32.mrf.mxu0
    %v1564 = vadd.f32 %v1484, %v1563
    %1565 = vmatmul.f32.gmra.mxu0 %v1511
    %v1566 = vpop.f32.mrf.mxu0
    %v1567 = vadd.f32 %v1484, %v1566
    %1568 = vmatmul.f32.gmra.mxu0 %v1514
    %v1569 = vpop.f32.mrf.mxu0
    %v1570 = vadd.f32 %v1484, %v1569
    %1571 = vmatmul.f32.gmra.mxu0 %v1517
    %v1572 = vpop.f32.mrf.mxu0
    %v1573 = vadd.f32 %v1484, %v1572
    %1574 = vmatmul.f32.gmra.mxu0 %v1520
    %v1575 = vpop.f32.mrf.mxu0
    %v1576 = vadd.f32 %v1484, %v1575
    %1577 = vmatmul.f32.gmra.mxu0 %v1523
    %v1578 = vpop.f32.mrf.mxu0
    %v1579 = vadd.f32 %v1484, %v1578
    %1580 = vdwg.mxu0
    %v1581 = vmax.f32 %v1543, 0.0
    %v1582 = vmax.f32 %v1546, 0.0
    %v1583 = vmax.f32 %v1549, 0.0
    %v1584 = vmax.f32 %v1552, 0.0
    %v1585 = vmax.f32 %v1555, 0.0
    %v1586 = vmax.f32 %v1558, 0.0
    %v1587 = vmax.f32 %v1561, 0.0
    %v1588 = vmax.f32 %v1564, 0.0
    %v1589 = vmax.f32 %v1567, 0.0
    %v1590 = vmax.f32 %v1570, 0.0
    %v1591 = vmax.f32 %v1573, 0.0
    %v1592 = vmax.f32 %v1576, 0.0
    %v1593 = vmax.f32 %v1579, 0.0
    %v1594 = vld [vmem:[#allocation11] sm:$0xff]
    %v1595 = vld [vmem:[#allocation11 + $0x8] sm:$0xff]
    %v1596 = vld [vmem:[#allocation11 + $0x10] sm:$0xff]
    %v1597 = vld [vmem:[#allocation11 + $0x18] sm:$0xff]
    %v1598 = vld [vmem:[%s15] sm:$0x1]
    %v1600 = vperm.slane %v1598, 0
    %v1603 = vsel %vm200, %v1581, 0
    %v1606 = vsel %vm200, %v1582, 0
    %v1609 = vsel %vm200, %v1583, 0
    %v1612 = vsel %vm200, %v1584, 0
    %v1615 = vsel %vm200, %v1585, 0
    %v1618 = vsel %vm200, %v1586, 0
    %v1621 = vsel %vm200, %v1587, 0
    %v1624 = vsel %vm200, %v1588, 0
    %v1627 = vsel %vm200, %v1589, 0
    %v1630 = vsel %vm200, %v1590, 0
    %v1633 = vsel %vm200, %v1591, 0
    %v1636 = vsel %vm200, %v1592, 0
    %v1639 = vsel %vm200, %v1593, 0
    %1641 = vmatpush.msra.mxu0 0.0
    %1642 = vmatpush.msra.mxu0 0.0
    %1643 = vmatpush.msra.mxu0 0.0
    %1644 = vmatpush.msra.mxu0 0.0
    %1645 = vmatpush.msra.mxu0 0.0
    %1646 = vmatpush.msra.mxu0 0.0
    %1647 = vmatpush.msra.mxu0 0.0
    %1648 = vmatpush.msra.mxu0 0.0
    %1649 = vmatpush.msra.mxu0 0.0
    %1650 = vmatpush.msra.mxu0 0.0
    %1651 = vmatpush.msra.mxu0 0.0
    %1652 = vmatpush.msra.mxu0 0.0
    %1653 = vmatpush.msra.mxu0 %v1597
    %1654 = vmatpush.msra.mxu0 %v1596
    %1655 = vmatpush.msra.mxu0 %v1595
    %1656 = vmatpush.msra.mxu0 %v1594
    %1657 = vmatmul.f32.gmra.mxu0 %v1603
    %v1658 = vpop.f32.mrf.mxu0
    %v1659 = vadd.f32 %v1600, %v1658
    %1660 = vmatmul.f32.gmra.mxu0 %v1606
    %v1661 = vpop.f32.mrf.mxu0
    %v1662 = vadd.f32 %v1600, %v1661
    %1663 = vmatmul.f32.gmra.mxu0 %v1609
    %v1664 = vpop.f32.mrf.mxu0
    %v1665 = vadd.f32 %v1600, %v1664
    %1666 = vmatmul.f32.gmra.mxu0 %v1612
    %v1667 = vpop.f32.mrf.mxu0
    %v1668 = vadd.f32 %v1600, %v1667
    %1669 = vmatmul.f32.gmra.mxu0 %v1615
    %v1670 = vpop.f32.mrf.mxu0
    %v1671 = vadd.f32 %v1600, %v1670
    %1672 = vmatmul.f32.gmra.mxu0 %v1618
    %v1673 = vpop.f32.mrf.mxu0
    %v1674 = vadd.f32 %v1600, %v1673
    %1675 = vmatmul.f32.gmra.mxu0 %v1621
    %v1676 = vpop.f32.mrf.mxu0
    %v1677 = vadd.f32 %v1600, %v1676
    %1678 = vmatmul.f32.gmra.mxu0 %v1624
    %v1679 = vpop.f32.mrf.mxu0
    %v1680 = vadd.f32 %v1600, %v1679
    %1681 = vmatmul.f32.gmra.mxu0 %v1627
    %v1682 = vpop.f32.mrf.mxu0
    %v1683 = vadd.f32 %v1600, %v1682
    %1684 = vmatmul.f32.gmra.mxu0 %v1630
    %v1685 = vpop.f32.mrf.mxu0
    %v1686 = vadd.f32 %v1600, %v1685
    %1687 = vmatmul.f32.gmra.mxu0 %v1633
    %v1688 = vpop.f32.mrf.mxu0
    %v1689 = vadd.f32 %v1600, %v1688
    %1690 = vmatmul.f32.gmra.mxu0 %v1636
    %v1691 = vpop.f32.mrf.mxu0
    %v1692 = vadd.f32 %v1600, %v1691
    %1693 = vmatmul.f32.gmra.mxu0 %v1639
    %v1694 = vpop.f32.mrf.mxu0
    %v1695 = vadd.f32 %v1600, %v1694
    %1696 = vdwg.mxu0
    %v1697 = vmax.f32 %v1659, 0.0
    %v1698 = vmax.f32 %v1662, 0.0
    %v1699 = vmax.f32 %v1665, 0.0
    %v1700 = vmax.f32 %v1668, 0.0
    %v1701 = vmax.f32 %v1671, 0.0
    %v1702 = vmax.f32 %v1674, 0.0
    %v1703 = vmax.f32 %v1677, 0.0
    %v1704 = vmax.f32 %v1680, 0.0
    %v1705 = vmax.f32 %v1683, 0.0
    %v1706 = vmax.f32 %v1686, 0.0
    %v1707 = vmax.f32 %v1689, 0.0
    %v1708 = vmax.f32 %v1692, 0.0
    %v1709 = vmax.f32 %v1695, 0.0
    %v1710 = vld [vmem:[#allocation13] sm:$0xff]
    %v1711 = vld [vmem:[#allocation13 + $0x8] sm:$0xff]
    %v1712 = vld [vmem:[#allocation13 + $0x10] sm:$0xff]
    %v1713 = vld [vmem:[#allocation13 + $0x18] sm:$0xff]
    %v1714 = vld [vmem:[%s16] sm:$0x1]
    %v1716 = vperm.slane %v1714, 0
    %v1719 = vsel %vm200, %v1697, 0
    %v1722 = vsel %vm200, %v1698, 0
    %v1725 = vsel %vm200, %v1699, 0
    %v1728 = vsel %vm200, %v1700, 0
    %v1731 = vsel %vm200, %v1701, 0
    %v1734 = vsel %vm200, %v1702, 0
    %v1737 = vsel %vm200, %v1703, 0
    %v1740 = vsel %vm200, %v1704, 0
    %v1743 = vsel %vm200, %v1705, 0
    %v1746 = vsel %vm200, %v1706, 0
    %v1749 = vsel %vm200, %v1707, 0
    %v1752 = vsel %vm200, %v1708, 0
    %v1755 = vsel %vm200, %v1709, 0
    %1757 = vmatpush.msra.mxu0 0.0
    %1758 = vmatpush.msra.mxu0 0.0
    %1759 = vmatpush.msra.mxu0 0.0
    %1760 = vmatpush.msra.mxu0 0.0
    %1761 = vmatpush.msra.mxu0 0.0
    %1762 = vmatpush.msra.mxu0 0.0
    %1763 = vmatpush.msra.mxu0 0.0
    %1764 = vmatpush.msra.mxu0 0.0
    %1765 = vmatpush.msra.mxu0 0.0
    %1766 = vmatpush.msra.mxu0 0.0
    %1767 = vmatpush.msra.mxu0 0.0
    %1768 = vmatpush.msra.mxu0 0.0
    %1769 = vmatpush.msra.mxu0 %v1713
    %1770 = vmatpush.msra.mxu0 %v1712
    %1771 = vmatpush.msra.mxu0 %v1711
    %1772 = vmatpush.msra.mxu0 %v1710
    %1773 = vmatmul.f32.gmra.mxu0 %v1719
    %v1774 = vpop.f32.mrf.mxu0
    %v1775 = vadd.f32 %v1716, %v1774
    %1776 = vmatmul.f32.gmra.mxu0 %v1722
    %v1777 = vpop.f32.mrf.mxu0
    %v1778 = vadd.f32 %v1716, %v1777
    %1779 = vmatmul.f32.gmra.mxu0 %v1725
    %v1780 = vpop.f32.mrf.mxu0
    %v1781 = vadd.f32 %v1716, %v1780
    %1782 = vmatmul.f32.gmra.mxu0 %v1728
    %v1783 = vpop.f32.mrf.mxu0
    %v1784 = vadd.f32 %v1716, %v1783
    %1785 = vmatmul.f32.gmra.mxu0 %v1731
    %v1786 = vpop.f32.mrf.mxu0
    %v1787 = vadd.f32 %v1716, %v1786
    %1788 = vmatmul.f32.gmra.mxu0 %v1734
    %v1789 = vpop.f32.mrf.mxu0
    %v1790 = vadd.f32 %v1716, %v1789
    %1791 = vmatmul.f32.gmra.mxu0 %v1737
    %v1792 = vpop.f32.mrf.mxu0
    %v1793 = vadd.f32 %v1716, %v1792
    %1794 = vmatmul.f32.gmra.mxu0 %v1740
    %v1795 = vpop.f32.mrf.mxu0
    %v1796 = vadd.f32 %v1716, %v1795
    %1797 = vmatmul.f32.gmra.mxu0 %v1743
    %v1798 = vpop.f32.mrf.mxu0
    %v1799 = vadd.f32 %v1716, %v1798
    %1800 = vmatmul.f32.gmra.mxu0 %v1746
    %v1801 = vpop.f32.mrf.mxu0
    %v1802 = vadd.f32 %v1716, %v1801
    %1803 = vmatmul.f32.gmra.mxu0 %v1749
    %v1804 = vpop.f32.mrf.mxu0
    %v1805 = vadd.f32 %v1716, %v1804
    %1806 = vmatmul.f32.gmra.mxu0 %v1752
    %v1807 = vpop.f32.mrf.mxu0
    %v1808 = vadd.f32 %v1716, %v1807
    %1809 = vmatmul.f32.gmra.mxu0 %v1755
    %v1810 = vpop.f32.mrf.mxu0
    %v1811 = vadd.f32 %v1716, %v1810
    %1812 = vdwg.mxu0
    %v1813 = vmax.f32 %v1775, 0.0
    %v1814 = vmax.f32 %v1778, 0.0
    %v1815 = vmax.f32 %v1781, 0.0
    %v1816 = vmax.f32 %v1784, 0.0
    %v1817 = vmax.f32 %v1787, 0.0
    %v1818 = vmax.f32 %v1790, 0.0
    %v1819 = vmax.f32 %v1793, 0.0
    %v1820 = vmax.f32 %v1796, 0.0
    %v1821 = vmax.f32 %v1799, 0.0
    %v1822 = vmax.f32 %v1802, 0.0
    %v1823 = vmax.f32 %v1805, 0.0
    %v1824 = vmax.f32 %v1808, 0.0
    %v1825 = vmax.f32 %v1811, 0.0
    %v1826 = vld [vmem:[%s13] sm:$0xff]
    %v1827 = vld [vmem:[%s13 + $0x8] sm:$0xff]
    %v1828 = vld [vmem:[%s13 + $0x10] sm:$0xff]
    %v1829 = vld [vmem:[%s13 + $0x18] sm:$0xff]
    %v1830 = vld [vmem:[%s17] sm:$0x1]
    %v1832 = vperm.slane %v1830, 0
    %v1835 = vsel %vm200, %v1813, 0
    %v1838 = vsel %vm200, %v1814, 0
    %v1841 = vsel %vm200, %v1815, 0
    %v1844 = vsel %vm200, %v1816, 0
    %v1847 = vsel %vm200, %v1817, 0
    %v1850 = vsel %vm200, %v1818, 0
    %v1853 = vsel %vm200, %v1819, 0
    %v1856 = vsel %vm200, %v1820, 0
    %v1859 = vsel %vm200, %v1821, 0
    %v1862 = vsel %vm200, %v1822, 0
    %v1865 = vsel %vm200, %v1823, 0
    %v1868 = vsel %vm200, %v1824, 0
    %v1871 = vsel %vm200, %v1825, 0
    %1873 = vmatpush.msra.mxu0 0.0
    %1874 = vmatpush.msra.mxu0 0.0
    %1875 = vmatpush.msra.mxu0 0.0
    %1876 = vmatpush.msra.mxu0 0.0
    %1877 = vmatpush.msra.mxu0 0.0
    %1878 = vmatpush.msra.mxu0 0.0
    %1879 = vmatpush.msra.mxu0 0.0
    %1880 = vmatpush.msra.mxu0 0.0
    %1881 = vmatpush.msra.mxu0 0.0
    %1882 = vmatpush.msra.mxu0 0.0
    %1883 = vmatpush.msra.mxu0 0.0
    %1884 = vmatpush.msra.mxu0 0.0
    %1885 = vmatpush.msra.mxu0 %v1829
    %1886 = vmatpush.msra.mxu0 %v1828
    %1887 = vmatpush.msra.mxu0 %v1827
    %1888 = vmatpush.msra.mxu0 %v1826
    %1889 = vmatmul.f32.gmra.mxu0 %v1835
    %v1890 = vpop.f32.mrf.mxu0
    %v1891 = vadd.f32 %v1832, %v1890
    %1892 = vmatmul.f32.gmra.mxu0 %v1838
    %v1893 = vpop.f32.mrf.mxu0
    %v1894 = vadd.f32 %v1832, %v1893
    %1895 = vmatmul.f32.gmra.mxu0 %v1841
    %v1896 = vpop.f32.mrf.mxu0
    %v1897 = vadd.f32 %v1832, %v1896
    %1898 = vmatmul.f32.gmra.mxu0 %v1844
    %v1899 = vpop.f32.mrf.mxu0
    %v1900 = vadd.f32 %v1832, %v1899
    %1901 = vmatmul.f32.gmra.mxu0 %v1847
    %v1902 = vpop.f32.mrf.mxu0
    %v1903 = vadd.f32 %v1832, %v1902
    %1904 = vmatmul.f32.gmra.mxu0 %v1850
    %v1905 = vpop.f32.mrf.mxu0
    %v1906 = vadd.f32 %v1832, %v1905
    %1907 = vmatmul.f32.gmra.mxu0 %v1853
    %v1908 = vpop.f32.mrf.mxu0
    %v1909 = vadd.f32 %v1832, %v1908
    %1910 = vmatmul.f32.gmra.mxu0 %v1856
    %v1911 = vpop.f32.mrf.mxu0
    %v1912 = vadd.f32 %v1832, %v1911
    %1913 = vmatmul.f32.gmra.mxu0 %v1859
    %v1914 = vpop.f32.mrf.mxu0
    %v1915 = vadd.f32 %v1832, %v1914
    %1916 = vmatmul.f32.gmra.mxu0 %v1862
    %v1917 = vpop.f32.mrf.mxu0
    %v1918 = vadd.f32 %v1832, %v1917
    %1919 = vmatmul.f32.gmra.mxu0 %v1865
    %v1920 = vpop.f32.mrf.mxu0
    %v1921 = vadd.f32 %v1832, %v1920
    %1922 = vmatmul.f32.gmra.mxu0 %v1868
    %v1923 = vpop.f32.mrf.mxu0
    %v1924 = vadd.f32 %v1832, %v1923
    %1925 = vmatmul.f32.gmra.mxu0 %v1871
    %v1926 = vpop.f32.mrf.mxu0
    %v1927 = vadd.f32 %v1832, %v1926
    %1928 = vdwg.mxu0
    %1929 = vst.msk [vmem:[%s18] sm:$0xff] %vm167, %v1891
    %1930 = vst.msk [vmem:[%s18 + $0x8] sm:$0xff] %vm167, %v1894
    %1931 = vst.msk [vmem:[%s18 + $0x10] sm:$0xff] %vm167, %v1897
    %1932 = vst.msk [vmem:[%s18 + $0x18] sm:$0xff] %vm167, %v1900
    %1933 = vst.msk [vmem:[%s18 + $0x20] sm:$0xff] %vm167, %v1903
    %1934 = vst.msk [vmem:[%s18 + $0x28] sm:$0xff] %vm167, %v1906
    %1935 = vst.msk [vmem:[%s18 + $0x30] sm:$0xff] %vm167, %v1909
    %1936 = vst.msk [vmem:[%s18 + $0x38] sm:$0xff] %vm167, %v1912
    %1937 = vst.msk [vmem:[%s18 + $0x40] sm:$0xff] %vm167, %v1915
    %1938 = vst.msk [vmem:[%s18 + $0x48] sm:$0xff] %vm167, %v1918
    %1939 = vst.msk [vmem:[%s18 + $0x50] sm:$0xff] %vm167, %v1921
    %1940 = vst.msk [vmem:[%s18 + $0x58] sm:$0xff] %vm167, %v1924
    %vm1941 = vcmask 125952
    %1942 = vst.msk [vmem:[%s18 + $0x60] sm:$0xf] %vm1941, %v1927
    // Predicated region
    $region102: #{tpu_custom_call.1} parent=1 // pred_check
      _
    $region103: #{tpu_custom_call.1} parent=1 // pred_check_branch
      %1944 = sbr.rel (0) target = $region105
    $region104: #{tpu_custom_call.1} parent=1 // pred_region
      _
    $region105: #{tpu_custom_call.1} parent=1 // pred_fallthru
      _
    // Predicated region
    $region106: #{tpu_custom_call.1} parent=1 // pred_check
      _
    $region107: #{tpu_custom_call.1} parent=1 // pred_check_branch
      %1946 = sbr.rel (0) target = $region109
    $region108: #{tpu_custom_call.1} parent=1 // pred_region
      _
    $region109: #{tpu_custom_call.1} parent=1 // pred_fallthru
      _
    %1947 = vsyncpa [#allocation4], 1
    %1948 = vsyncpa [#allocation6], 1
    %1949 = vsyncpa [#allocation9], 1
    %1950 = vsyncpa [#allocation12], 1

</llo_original>
